<compile_context>
chip_gen: v6e
topology: v6e:2x2x1
jax: 0.10.0
libtpu: 0.0.40
codegen_flags: <defaults>
</compile_context>

<pallas_src>
import functools

import jax
import jax.numpy as jnp
from jax import lax
from jax.experimental import pallas as pl
from jax.experimental.pallas import tpu as pltpu  # noqa: F401  (operands are VMEM-resident by default; no TPU-specific params needed at this size)

# ---- module hyper-parameters (small, consistent with the reference module) ----
N_HEADS = 4
N_EMBED = 32                       # DEFAULT_EMBED
BLOCK_SIZE = 8                     # DEFAULT_BLOCK_SIZE (sequence length T)
HEAD_SIZE = N_EMBED // N_HEADS     # 8
FF_HIDDEN = 4 * N_EMBED            # 128
EPS = 1e-5                         # nn.LayerNorm default eps
MASK_VALUE = -1e30                 # finite "minus infinity" for the causal mask


def _layernorm(x, g, b):
    mu = jnp.mean(x, axis=-1, keepdims=True)
    var = jnp.mean((x - mu) ** 2, axis=-1, keepdims=True)
    return (x - mu) * lax.rsqrt(var + EPS) * g + b


def block_kernel(x_ref,
                 ln1_g_ref, ln1_b_ref,
                 s_ref, m_ref, bproj_ref,
                 ln2_g_ref, ln2_b_ref,
                 w1_ref, b1_ref, w2_ref, b2_ref,
                 o_ref, *, batch, seq):
    """Whole transformer block in one invocation; tokens flattened to (B*T, C)."""
    x = x_ref[...].astype(jnp.float32)                      # (BT, C)
    bt, c = x.shape
    n_heads = s_ref.shape[0]

    # ---------------- sub-block 1: x = x + MHA(LN1(x)) ----------------
    xn = _layernorm(x, ln1_g_ref[...], ln1_b_ref[...])      # (BT, C)
    xn3 = xn.reshape(batch, seq, c)                         # (B, T, C)  (sublane split, free)

    # causal mask, built once (hoisted out of the head loop)
    row = lax.broadcasted_iota(jnp.int32, (seq, seq), 0)
    col = lax.broadcasted_iota(jnp.int32, (seq, seq), 1)
    causal = row >= col                                     # (T, T), broadcast over B
    neg = jnp.float32(MASK_VALUE)

    attn = jnp.zeros((batch, seq, c), jnp.float32)
    for h in range(n_heads):                                # static unroll (4 heads)
        # scores_b = xn_b @ S_h @ xn_b^T   (scale already folded into S_h)
        xs = jnp.dot(xn, s_ref[h],
                     preferred_element_type=jnp.float32).reshape(batch, seq, c)
        sc = jnp.einsum('btc,bsc->bts', xs, xn3,
                        preferred_element_type=jnp.float32)        # (B, T, T)
        sc = jnp.where(causal, sc, neg)
        sc = sc - jnp.max(sc, axis=-1, keepdims=True)
        p = jnp.exp(sc)
        denom = jnp.sum(p, axis=-1, keepdims=True)
        p = p * pl.reciprocal(denom, approx=True)                  # EUP reciprocal

        # head contribution to the projected output: p_b @ (xn_b @ M_h)
        xm = jnp.dot(xn, m_ref[h],
                     preferred_element_type=jnp.float32).reshape(batch, seq, c)
        attn = attn + jnp.einsum('bts,bsc->btc', p, xm,
                                 preferred_element_type=jnp.float32)

    x1 = x + attn.reshape(bt, c) + bproj_ref[...]            # residual + proj bias

    # ---------------- sub-block 2: x = x + FFN(LN2(x)) ----------------
    xn2 = _layernorm(x1, ln2_g_ref[...], ln2_b_ref[...])
    hid = jnp.dot(xn2, w1_ref[...],
                  preferred_element_type=jnp.float32) + b1_ref[...]
    hid = jnp.maximum(hid, 0.0)                              # ReLU
    ff = jnp.dot(hid, w2_ref[...],
                 preferred_element_type=jnp.float32) + b2_ref[...]

    o_ref[...] = (x1 + ff).astype(o_ref.dtype)


def transformer_block(x, params):
    (ln1_g, ln1_b, wq, wk, wv, wproj, bproj,
     ln2_g, ln2_b, w1, b1, w2, b2) = params
    B, T, C = x.shape
    H, hs = N_HEADS, HEAD_SIZE
    scale = 1.0 / (hs ** 0.5)

    # ---- wrapper-side (trace-time) algebraic fold of the per-head projections ----
    # columns of wq/wk/wv and rows of wproj are grouped by head: index = h*hs + d
    wq_h = wq.reshape(C, H, hs)
    wk_h = wk.reshape(C, H, hs)
    wv_h = wv.reshape(C, H, hs)
    wp_h = wproj.reshape(H, hs, C)
    s_mat = jnp.einsum('chd,ehd->hce', wq_h, wk_h) * scale   # (H, C, C): Wq_h Wk_h^T / sqrt(hs)
    m_mat = jnp.einsum('chd,hdf->hcf', wv_h, wp_h)           # (H, C, C): Wv_h Wproj_h

    x2d = x.reshape(B * T, C)                                # lane-dim C untouched; free
    kernel = functools.partial(block_kernel, batch=B, seq=T)

    out2d = pl.pallas_call(
        kernel,
        out_shape=jax.ShapeDtypeStruct((B * T, C), x.dtype),
        # no grid: single invocation, all operands fully VMEM-resident (~70 KB)
    )(x2d, ln1_g, ln1_b, s_mat, m_mat, bproj, ln2_g, ln2_b, w1, b1, w2, b2)
    return out2d.reshape(B, T, C)


# ------------------------- pure-JAX reference -------------------------
def reference_block(x, params):
    (ln1_g, ln1_b, wq, wk, wv, wproj, bproj,
     ln2_g, ln2_b, w1, b1, w2, b2) = params

    def ln(z, g, b):
        mu = z.mean(-1, keepdims=True)
        var = ((z - mu) ** 2).mean(-1, keepdims=True)
        return (z - mu) / jnp.sqrt(var + EPS) * g + b

    B, T, C = x.shape
    xn = ln(x, ln1_g, ln1_b)
    q = (xn @ wq).reshape(B, T, N_HEADS, HEAD_SIZE).transpose(0, 2, 1, 3)
    k = (xn @ wk).reshape(B, T, N_HEADS, HEAD_SIZE).transpose(0, 2, 1, 3)
    v = (xn @ wv).reshape(B, T, N_HEADS, HEAD_SIZE).transpose(0, 2, 1, 3)
    s = jnp.einsum('bhqd,bhkd->bhqk', q, k) / jnp.sqrt(float(HEAD_SIZE))
    mask = jnp.tril(jnp.ones((T, T), bool))
    s = jnp.where(mask, s, -jnp.inf)
    p = jax.nn.softmax(s, axis=-1)
    o = jnp.einsum('bhqk,bhkd->bhqd', p, v).transpose(0, 2, 1, 3).reshape(B, T, C)
    x = x + o @ wproj + bproj
    xn2 = ln(x, ln2_g, ln2_b)
    ff = jnp.maximum(xn2 @ w1 + b1, 0.0) @ w2 + b2
    return x + ff


def make_params(key):
    ks = jax.random.split(key, 8)
    f32 = jnp.float32
    init = lambda k, shape: (0.02 * jax.random.normal(k, shape)).astype(f32)
    ln1_g = jnp.ones((1, N_EMBED), f32)
    ln1_b = jnp.zeros((1, N_EMBED), f32)
    wq = init(ks[0], (N_EMBED, N_EMBED))
    wk = init(ks[1], (N_EMBED, N_EMBED))
    wv = init(ks[2], (N_EMBED, N_EMBED))
    wproj = init(ks[3], (N_EMBED, N_EMBED))
    bproj = init(ks[4], (1, N_EMBED))
    ln2_g = jnp.ones((1, N_EMBED), f32)
    ln2_b = jnp.zeros((1, N_EMBED), f32)
    w1 = init(ks[5], (N_EMBED, FF_HIDDEN))
    b1 = init(ks[6], (1, FF_HIDDEN))
    w2 = init(ks[7], (FF_HIDDEN, N_EMBED))
    b2 = jnp.zeros((1, N_EMBED), f32)
    return (ln1_g, ln1_b, wq, wk, wv, wproj, bproj,
            ln2_g, ln2_b, w1, b1, w2, b2)


if __name__ == "__main__":
    key = jax.random.PRNGKey(0)
    k_x, k_p = jax.random.split(key)

    B, T, C = 2, BLOCK_SIZE, N_EMBED          # (2, 8, 32)
    x = jax.random.normal(k_x, (B, T, C), dtype=jnp.float32)
    params = make_params(k_p)

    fwd = jax.jit(transformer_block)
    out = jax.block_until_ready(fwd(x, params))

    ref = reference_block(x, params)
    assert out.shape == (B, T, C) and out.dtype == jnp.float32
    err = float(jnp.max(jnp.abs(out - ref)))
    # Tolerance is 5e-4 (instead of 1e-5) solely because the softmax denominator
    # uses the approximate EUP reciprocal (pl.reciprocal(..., approx=True));
    # all other math is exact f32 up to reassociation.
    assert err < 5e-4, f"max abs err {err}"

    print("KERNEL_OK")
</pallas_src>

<mosaic_0001>
module attributes {stable_mosaic.version = 11 : i64} {
  func.func @block_kernel(%arg0: memref<16x32xf32, #tpu.memory_space<vmem>>, %arg1: memref<1x32xf32, #tpu.memory_space<vmem>>, %arg2: memref<1x32xf32, #tpu.memory_space<vmem>>, %arg3: memref<4x32x32xf32, #tpu.memory_space<vmem>>, %arg4: memref<4x32x32xf32, #tpu.memory_space<vmem>>, %arg5: memref<1x32xf32, #tpu.memory_space<vmem>>, %arg6: memref<1x32xf32, #tpu.memory_space<vmem>>, %arg7: memref<1x32xf32, #tpu.memory_space<vmem>>, %arg8: memref<32x128xf32, #tpu.memory_space<vmem>>, %arg9: memref<1x128xf32, #tpu.memory_space<vmem>>, %arg10: memref<128x32xf32, #tpu.memory_space<vmem>>, %arg11: memref<1x32xf32, #tpu.memory_space<vmem>>, %arg12: memref<16x32xf32, #tpu.memory_space<vmem>>) attributes {dimension_semantics = [], scalar_prefetch = 0 : i64, scratch_operands = 0 : i64, tpu.core_type = #tpu.core_type<tc>} {
    %c0 = arith.constant 0 : index
    %c0_0 = arith.constant 0 : index
    %0 = vector.load %arg0[%c0, %c0_0] : memref<16x32xf32, #tpu.memory_space<vmem>>, vector<16x32xf32>
    %c0_1 = arith.constant 0 : index
    %c0_2 = arith.constant 0 : index
    %1 = vector.load %arg1[%c0_1, %c0_2] : memref<1x32xf32, #tpu.memory_space<vmem>>, vector<1x32xf32>
    %c0_3 = arith.constant 0 : index
    %c0_4 = arith.constant 0 : index
    %2 = vector.load %arg2[%c0_3, %c0_4] : memref<1x32xf32, #tpu.memory_space<vmem>>, vector<1x32xf32>
    %cst = arith.constant dense<0.000000e+00> : vector<16xf32>
    %3 = vector.multi_reduction <add>, %0, %cst [1] : vector<16x32xf32> to vector<16xf32>
    %4 = vector.shape_cast %3 : vector<16xf32> to vector<16x1xf32>
    %cst_5 = arith.constant 3.200000e+01 : f32
    %5 = vector.broadcast %cst_5 : f32 to vector<16x1xf32>
    %6 = arith.divf %4, %5 : vector<16x1xf32>
    %7 = vector.broadcast %6 : vector<16x1xf32> to vector<16x32xf32>
    %8 = arith.subf %0, %7 : vector<16x32xf32>
    %9 = arith.mulf %8, %8 : vector<16x32xf32>
    %cst_6 = arith.constant dense<0.000000e+00> : vector<16xf32>
    %10 = vector.multi_reduction <add>, %9, %cst_6 [1] : vector<16x32xf32> to vector<16xf32>
    %11 = vector.shape_cast %10 : vector<16xf32> to vector<16x1xf32>
    %cst_7 = arith.constant 3.200000e+01 : f32
    %12 = vector.broadcast %cst_7 : f32 to vector<16x1xf32>
    %13 = arith.divf %11, %12 : vector<16x1xf32>
    %14 = vector.broadcast %6 : vector<16x1xf32> to vector<16x32xf32>
    %15 = arith.subf %0, %14 : vector<16x32xf32>
    %cst_8 = arith.constant 9.99999974E-6 : f32
    %16 = vector.broadcast %cst_8 : f32 to vector<16x1xf32>
    %17 = arith.addf %13, %16 : vector<16x1xf32>
    %18 = math.rsqrt %17 : vector<16x1xf32>
    %19 = vector.broadcast %18 : vector<16x1xf32> to vector<16x32xf32>
    %20 = arith.mulf %15, %19 : vector<16x32xf32>
    %21 = vector.broadcast %1 : vector<1x32xf32> to vector<16x32xf32>
    %22 = arith.mulf %20, %21 : vector<16x32xf32>
    %23 = vector.broadcast %2 : vector<1x32xf32> to vector<16x32xf32>
    %24 = arith.addf %22, %23 : vector<16x32xf32>
    %25 = vector.shape_cast %24 : vector<16x32xf32> to vector<2x8x32xf32>
    %26 = tpu.iota {dimensions = array<i32: 0>} : vector<8x8xi32>
    %27 = tpu.iota {dimensions = array<i32: 1>} : vector<8x8xi32>
    %28 = arith.cmpi sge, %26, %27 : vector<8x8xi32>
    %cst_9 = arith.constant 0.000000e+00 : f32
    %29 = vector.broadcast %cst_9 : f32 to vector<2x8x32xf32>
    %c0_10 = arith.constant 0 : index
    %c0_11 = arith.constant 0 : index
    %c0_12 = arith.constant 0 : index
    %30 = vector.load %arg3[%c0_10, %c0_11, %c0_12] : memref<4x32x32xf32, #tpu.memory_space<vmem>>, vector<1x32x32xf32>
    %31 = vector.shape_cast %30 : vector<1x32x32xf32> to vector<32x32xf32>
    %cst_13 = arith.constant dense<0.000000e+00> : vector<16x32xf32>
    %32 = tpu.matmul %24, %31, %cst_13 {dimension_numbers = #tpu.dot_dimension_numbers<[1], [0], [0], [1], [0, 0, 1, 1], [], []>} : vector<16x32xf32>, vector<32x32xf32>, vector<16x32xf32> -> vector<16x32xf32>
    %33 = vector.shape_cast %32 : vector<16x32xf32> to vector<2x8x32xf32>
    "tpu.trace_start"() <{level = 10 : i32, message = "btc,bsc->bts"}> : () -> ()
    %cst_14 = arith.constant dense<0.000000e+00> : vector<2x8x8xf32>
    %34 = tpu.matmul %33, %25, %cst_14 {dimension_numbers = #tpu.dot_dimension_numbers<[2], [2], [1], [1], [0, 0, 0, 1, 1, 1], [0], [0]>} : vector<2x8x32xf32>, vector<2x8x32xf32>, vector<2x8x8xf32> -> vector<2x8x8xf32>
    %cst_15 = arith.constant -1.000000e+30 : f32
    "tpu.trace_stop"() : () -> ()
    %35 = vector.shape_cast %28 : vector<8x8xi1> to vector<1x8x8xi1>
    %36 = vector.broadcast %35 : vector<1x8x8xi1> to vector<2x8x8xi1>
    %37 = vector.broadcast %cst_15 : f32 to vector<2x8x8xf32>
    %38 = arith.select %36, %34, %37 : vector<2x8x8xi1>, vector<2x8x8xf32>
    %cst_16 = arith.constant dense<0xFF800000> : vector<2x8xf32>
    %39 = vector.multi_reduction <maximumf>, %38, %cst_16 [2] : vector<2x8x8xf32> to vector<2x8xf32>
    %40 = vector.shape_cast %39 : vector<2x8xf32> to vector<2x8x1xf32>
    %41 = vector.broadcast %40 : vector<2x8x1xf32> to vector<2x8x8xf32>
    %42 = arith.subf %38, %41 : vector<2x8x8xf32>
    %43 = math.exp %42 : vector<2x8x8xf32>
    %cst_17 = arith.constant dense<0.000000e+00> : vector<2x8xf32>
    %44 = vector.multi_reduction <add>, %43, %cst_17 [2] : vector<2x8x8xf32> to vector<2x8xf32>
    %45 = vector.shape_cast %44 : vector<2x8xf32> to vector<2x8x1xf32>
    %46 = tpu.reciprocal %45 {approx = true} : vector<2x8x1xf32> -> vector<2x8x1xf32>
    %47 = vector.broadcast %46 : vector<2x8x1xf32> to vector<2x8x8xf32>
    %48 = arith.mulf %43, %47 : vector<2x8x8xf32>
    %c0_18 = arith.constant 0 : index
    %c0_19 = arith.constant 0 : index
    %c0_20 = arith.constant 0 : index
    %49 = vector.load %arg4[%c0_18, %c0_19, %c0_20] : memref<4x32x32xf32, #tpu.memory_space<vmem>>, vector<1x32x32xf32>
    %50 = vector.shape_cast %49 : vector<1x32x32xf32> to vector<32x32xf32>
    %cst_21 = arith.constant dense<0.000000e+00> : vector<16x32xf32>
    %51 = tpu.matmul %24, %50, %cst_21 {dimension_numbers = #tpu.dot_dimension_numbers<[1], [0], [0], [1], [0, 0, 1, 1], [], []>} : vector<16x32xf32>, vector<32x32xf32>, vector<16x32xf32> -> vector<16x32xf32>
    %52 = vector.shape_cast %51 : vector<16x32xf32> to vector<2x8x32xf32>
    "tpu.trace_start"() <{level = 10 : i32, message = "bts,bsc->btc"}> : () -> ()
    %cst_22 = arith.constant dense<0.000000e+00> : vector<2x8x32xf32>
    %53 = tpu.matmul %48, %52, %cst_22 {dimension_numbers = #tpu.dot_dimension_numbers<[2], [1], [1], [2], [0, 0, 0, 1, 1, 2], [0], [0]>} : vector<2x8x8xf32>, vector<2x8x32xf32>, vector<2x8x32xf32> -> vector<2x8x32xf32>
    "tpu.trace_stop"() : () -> ()
    %54 = arith.addf %29, %53 : vector<2x8x32xf32>
    %c1 = arith.constant 1 : index
    %c0_23 = arith.constant 0 : index
    %c0_24 = arith.constant 0 : index
    %55 = vector.load %arg3[%c1, %c0_23, %c0_24] : memref<4x32x32xf32, #tpu.memory_space<vmem>>, vector<1x32x32xf32>
    %56 = vector.shape_cast %55 : vector<1x32x32xf32> to vector<32x32xf32>
    %cst_25 = arith.constant dense<0.000000e+00> : vector<16x32xf32>
    %57 = tpu.matmul %24, %56, %cst_25 {dimension_numbers = #tpu.dot_dimension_numbers<[1], [0], [0], [1], [0, 0, 1, 1], [], []>} : vector<16x32xf32>, vector<32x32xf32>, vector<16x32xf32> -> vector<16x32xf32>
    %58 = vector.shape_cast %57 : vector<16x32xf32> to vector<2x8x32xf32>
    "tpu.trace_start"() <{level = 10 : i32, message = "btc,bsc->bts"}> : () -> ()
    %cst_26 = arith.constant dense<0.000000e+00> : vector<2x8x8xf32>
    %59 = tpu.matmul %58, %25, %cst_26 {dimension_numbers = #tpu.dot_dimension_numbers<[2], [2], [1], [1], [0, 0, 0, 1, 1, 1], [0], [0]>} : vector<2x8x32xf32>, vector<2x8x32xf32>, vector<2x8x8xf32> -> vector<2x8x8xf32>
    %cst_27 = arith.constant -1.000000e+30 : f32
    "tpu.trace_stop"() : () -> ()
    %60 = vector.shape_cast %28 : vector<8x8xi1> to vector<1x8x8xi1>
    %61 = vector.broadcast %60 : vector<1x8x8xi1> to vector<2x8x8xi1>
    %62 = vector.broadcast %cst_27 : f32 to vector<2x8x8xf32>
    %63 = arith.select %61, %59, %62 : vector<2x8x8xi1>, vector<2x8x8xf32>
    %cst_28 = arith.constant dense<0xFF800000> : vector<2x8xf32>
    %64 = vector.multi_reduction <maximumf>, %63, %cst_28 [2] : vector<2x8x8xf32> to vector<2x8xf32>
    %65 = vector.shape_cast %64 : vector<2x8xf32> to vector<2x8x1xf32>
    %66 = vector.broadcast %65 : vector<2x8x1xf32> to vector<2x8x8xf32>
    %67 = arith.subf %63, %66 : vector<2x8x8xf32>
    %68 = math.exp %67 : vector<2x8x8xf32>
    %cst_29 = arith.constant dense<0.000000e+00> : vector<2x8xf32>
    %69 = vector.multi_reduction <add>, %68, %cst_29 [2] : vector<2x8x8xf32> to vector<2x8xf32>
    %70 = vector.shape_cast %69 : vector<2x8xf32> to vector<2x8x1xf32>
    %71 = tpu.reciprocal %70 {approx = true} : vector<2x8x1xf32> -> vector<2x8x1xf32>
    %72 = vector.broadcast %71 : vector<2x8x1xf32> to vector<2x8x8xf32>
    %73 = arith.mulf %68, %72 : vector<2x8x8xf32>
    %c1_30 = arith.constant 1 : index
    %c0_31 = arith.constant 0 : index
    %c0_32 = arith.constant 0 : index
    %74 = vector.load %arg4[%c1_30, %c0_31, %c0_32] : memref<4x32x32xf32, #tpu.memory_space<vmem>>, vector<1x32x32xf32>
    %75 = vector.shape_cast %74 : vector<1x32x32xf32> to vector<32x32xf32>
    %cst_33 = arith.constant dense<0.000000e+00> : vector<16x32xf32>
    %76 = tpu.matmul %24, %75, %cst_33 {dimension_numbers = #tpu.dot_dimension_numbers<[1], [0], [0], [1], [0, 0, 1, 1], [], []>} : vector<16x32xf32>, vector<32x32xf32>, vector<16x32xf32> -> vector<16x32xf32>
    %77 = vector.shape_cast %76 : vector<16x32xf32> to vector<2x8x32xf32>
    "tpu.trace_start"() <{level = 10 : i32, message = "bts,bsc->btc"}> : () -> ()
    %cst_34 = arith.constant dense<0.000000e+00> : vector<2x8x32xf32>
    %78 = tpu.matmul %73, %77, %cst_34 {dimension_numbers = #tpu.dot_dimension_numbers<[2], [1], [1], [2], [0, 0, 0, 1, 1, 2], [0], [0]>} : vector<2x8x8xf32>, vector<2x8x32xf32>, vector<2x8x32xf32> -> vector<2x8x32xf32>
    "tpu.trace_stop"() : () -> ()
    %79 = arith.addf %54, %78 : vector<2x8x32xf32>
    %c2 = arith.constant 2 : index
    %c0_35 = arith.constant 0 : index
    %c0_36 = arith.constant 0 : index
    %80 = vector.load %arg3[%c2, %c0_35, %c0_36] : memref<4x32x32xf32, #tpu.memory_space<vmem>>, vector<1x32x32xf32>
    %81 = vector.shape_cast %80 : vector<1x32x32xf32> to vector<32x32xf32>
    %cst_37 = arith.constant dense<0.000000e+00> : vector<16x32xf32>
    %82 = tpu.matmul %24, %81, %cst_37 {dimension_numbers = #tpu.dot_dimension_numbers<[1], [0], [0], [1], [0, 0, 1, 1], [], []>} : vector<16x32xf32>, vector<32x32xf32>, vector<16x32xf32> -> vector<16x32xf32>
    %83 = vector.shape_cast %82 : vector<16x32xf32> to vector<2x8x32xf32>
    "tpu.trace_start"() <{level = 10 : i32, message = "btc,bsc->bts"}> : () -> ()
    %cst_38 = arith.constant dense<0.000000e+00> : vector<2x8x8xf32>
    %84 = tpu.matmul %83, %25, %cst_38 {dimension_numbers = #tpu.dot_dimension_numbers<[2], [2], [1], [1], [0, 0, 0, 1, 1, 1], [0], [0]>} : vector<2x8x32xf32>, vector<2x8x32xf32>, vector<2x8x8xf32> -> vector<2x8x8xf32>
    %cst_39 = arith.constant -1.000000e+30 : f32
    "tpu.trace_stop"() : () -> ()
    %85 = vector.shape_cast %28 : vector<8x8xi1> to vector<1x8x8xi1>
    %86 = vector.broadcast %85 : vector<1x8x8xi1> to vector<2x8x8xi1>
    %87 = vector.broadcast %cst_39 : f32 to vector<2x8x8xf32>
    %88 = arith.select %86, %84, %87 : vector<2x8x8xi1>, vector<2x8x8xf32>
    %cst_40 = arith.constant dense<0xFF800000> : vector<2x8xf32>
    %89 = vector.multi_reduction <maximumf>, %88, %cst_40 [2] : vector<2x8x8xf32> to vector<2x8xf32>
    %90 = vector.shape_cast %89 : vector<2x8xf32> to vector<2x8x1xf32>
    %91 = vector.broadcast %90 : vector<2x8x1xf32> to vector<2x8x8xf32>
    %92 = arith.subf %88, %91 : vector<2x8x8xf32>
    %93 = math.exp %92 : vector<2x8x8xf32>
    %cst_41 = arith.constant dense<0.000000e+00> : vector<2x8xf32>
    %94 = vector.multi_reduction <add>, %93, %cst_41 [2] : vector<2x8x8xf32> to vector<2x8xf32>
    %95 = vector.shape_cast %94 : vector<2x8xf32> to vector<2x8x1xf32>
    %96 = tpu.reciprocal %95 {approx = true} : vector<2x8x1xf32> -> vector<2x8x1xf32>
    %97 = vector.broadcast %96 : vector<2x8x1xf32> to vector<2x8x8xf32>
    %98 = arith.mulf %93, %97 : vector<2x8x8xf32>
    %c2_42 = arith.constant 2 : index
    %c0_43 = arith.constant 0 : index
    %c0_44 = arith.constant 0 : index
    %99 = vector.load %arg4[%c2_42, %c0_43, %c0_44] : memref<4x32x32xf32, #tpu.memory_space<vmem>>, vector<1x32x32xf32>
    %100 = vector.shape_cast %99 : vector<1x32x32xf32> to vector<32x32xf32>
    %cst_45 = arith.constant dense<0.000000e+00> : vector<16x32xf32>
    %101 = tpu.matmul %24, %100, %cst_45 {dimension_numbers = #tpu.dot_dimension_numbers<[1], [0], [0], [1], [0, 0, 1, 1], [], []>} : vector<16x32xf32>, vector<32x32xf32>, vector<16x32xf32> -> vector<16x32xf32>
    %102 = vector.shape_cast %101 : vector<16x32xf32> to vector<2x8x32xf32>
    "tpu.trace_start"() <{level = 10 : i32, message = "bts,bsc->btc"}> : () -> ()
    %cst_46 = arith.constant dense<0.000000e+00> : vector<2x8x32xf32>
    %103 = tpu.matmul %98, %102, %cst_46 {dimension_numbers = #tpu.dot_dimension_numbers<[2], [1], [1], [2], [0, 0, 0, 1, 1, 2], [0], [0]>} : vector<2x8x8xf32>, vector<2x8x32xf32>, vector<2x8x32xf32> -> vector<2x8x32xf32>
    "tpu.trace_stop"() : () -> ()
    %104 = arith.addf %79, %103 : vector<2x8x32xf32>
    %c3 = arith.constant 3 : index
    %c0_47 = arith.constant 0 : index
    %c0_48 = arith.constant 0 : index
    %105 = vector.load %arg3[%c3, %c0_47, %c0_48] : memref<4x32x32xf32, #tpu.memory_space<vmem>>, vector<1x32x32xf32>
    %106 = vector.shape_cast %105 : vector<1x32x32xf32> to vector<32x32xf32>
    %cst_49 = arith.constant dense<0.000000e+00> : vector<16x32xf32>
    %107 = tpu.matmul %24, %106, %cst_49 {dimension_numbers = #tpu.dot_dimension_numbers<[1], [0], [0], [1], [0, 0, 1, 1], [], []>} : vector<16x32xf32>, vector<32x32xf32>, vector<16x32xf32> -> vector<16x32xf32>
    %108 = vector.shape_cast %107 : vector<16x32xf32> to vector<2x8x32xf32>
    "tpu.trace_start"() <{level = 10 : i32, message = "btc,bsc->bts"}> : () -> ()
    %cst_50 = arith.constant dense<0.000000e+00> : vector<2x8x8xf32>
    %109 = tpu.matmul %108, %25, %cst_50 {dimension_numbers = #tpu.dot_dimension_numbers<[2], [2], [1], [1], [0, 0, 0, 1, 1, 1], [0], [0]>} : vector<2x8x32xf32>, vector<2x8x32xf32>, vector<2x8x8xf32> -> vector<2x8x8xf32>
    %cst_51 = arith.constant -1.000000e+30 : f32
    "tpu.trace_stop"() : () -> ()
    %110 = vector.shape_cast %28 : vector<8x8xi1> to vector<1x8x8xi1>
    %111 = vector.broadcast %110 : vector<1x8x8xi1> to vector<2x8x8xi1>
    %112 = vector.broadcast %cst_51 : f32 to vector<2x8x8xf32>
    %113 = arith.select %111, %109, %112 : vector<2x8x8xi1>, vector<2x8x8xf32>
    %cst_52 = arith.constant dense<0xFF800000> : vector<2x8xf32>
    %114 = vector.multi_reduction <maximumf>, %113, %cst_52 [2] : vector<2x8x8xf32> to vector<2x8xf32>
    %115 = vector.shape_cast %114 : vector<2x8xf32> to vector<2x8x1xf32>
    %116 = vector.broadcast %115 : vector<2x8x1xf32> to vector<2x8x8xf32>
    %117 = arith.subf %113, %116 : vector<2x8x8xf32>
    %118 = math.exp %117 : vector<2x8x8xf32>
    %cst_53 = arith.constant dense<0.000000e+00> : vector<2x8xf32>
    %119 = vector.multi_reduction <add>, %118, %cst_53 [2] : vector<2x8x8xf32> to vector<2x8xf32>
    %120 = vector.shape_cast %119 : vector<2x8xf32> to vector<2x8x1xf32>
    %121 = tpu.reciprocal %120 {approx = true} : vector<2x8x1xf32> -> vector<2x8x1xf32>
    %122 = vector.broadcast %121 : vector<2x8x1xf32> to vector<2x8x8xf32>
    %123 = arith.mulf %118, %122 : vector<2x8x8xf32>
    %c3_54 = arith.constant 3 : index
    %c0_55 = arith.constant 0 : index
    %c0_56 = arith.constant 0 : index
    %124 = vector.load %arg4[%c3_54, %c0_55, %c0_56] : memref<4x32x32xf32, #tpu.memory_space<vmem>>, vector<1x32x32xf32>
    %125 = vector.shape_cast %124 : vector<1x32x32xf32> to vector<32x32xf32>
    %cst_57 = arith.constant dense<0.000000e+00> : vector<16x32xf32>
    %126 = tpu.matmul %24, %125, %cst_57 {dimension_numbers = #tpu.dot_dimension_numbers<[1], [0], [0], [1], [0, 0, 1, 1], [], []>} : vector<16x32xf32>, vector<32x32xf32>, vector<16x32xf32> -> vector<16x32xf32>
    %127 = vector.shape_cast %126 : vector<16x32xf32> to vector<2x8x32xf32>
    "tpu.trace_start"() <{level = 10 : i32, message = "bts,bsc->btc"}> : () -> ()
    %cst_58 = arith.constant dense<0.000000e+00> : vector<2x8x32xf32>
    %128 = tpu.matmul %123, %127, %cst_58 {dimension_numbers = #tpu.dot_dimension_numbers<[2], [1], [1], [2], [0, 0, 0, 1, 1, 2], [0], [0]>} : vector<2x8x8xf32>, vector<2x8x32xf32>, vector<2x8x32xf32> -> vector<2x8x32xf32>
    "tpu.trace_stop"() : () -> ()
    %129 = arith.addf %104, %128 : vector<2x8x32xf32>
    %130 = vector.shape_cast %129 : vector<2x8x32xf32> to vector<16x32xf32>
    %131 = arith.addf %0, %130 : vector<16x32xf32>
    %c0_59 = arith.constant 0 : index
    %c0_60 = arith.constant 0 : index
    %132 = vector.load %arg5[%c0_59, %c0_60] : memref<1x32xf32, #tpu.memory_space<vmem>>, vector<1x32xf32>
    %133 = vector.broadcast %132 : vector<1x32xf32> to vector<16x32xf32>
    %134 = arith.addf %131, %133 : vector<16x32xf32>
    %c0_61 = arith.constant 0 : index
    %c0_62 = arith.constant 0 : index
    %135 = vector.load %arg6[%c0_61, %c0_62] : memref<1x32xf32, #tpu.memory_space<vmem>>, vector<1x32xf32>
    %c0_63 = arith.constant 0 : index
    %c0_64 = arith.constant 0 : index
    %136 = vector.load %arg7[%c0_63, %c0_64] : memref<1x32xf32, #tpu.memory_space<vmem>>, vector<1x32xf32>
    %cst_65 = arith.constant dense<0.000000e+00> : vector<16xf32>
    %137 = vector.multi_reduction <add>, %134, %cst_65 [1] : vector<16x32xf32> to vector<16xf32>
    %138 = vector.shape_cast %137 : vector<16xf32> to vector<16x1xf32>
    %cst_66 = arith.constant 3.200000e+01 : f32
    %139 = vector.broadcast %cst_66 : f32 to vector<16x1xf32>
    %140 = arith.divf %138, %139 : vector<16x1xf32>
    %141 = vector.broadcast %140 : vector<16x1xf32> to vector<16x32xf32>
    %142 = arith.subf %134, %141 : vector<16x32xf32>
    %143 = arith.mulf %142, %142 : vector<16x32xf32>
    %cst_67 = arith.constant dense<0.000000e+00> : vector<16xf32>
    %144 = vector.multi_reduction <add>, %143, %cst_67 [1] : vector<16x32xf32> to vector<16xf32>
    %145 = vector.shape_cast %144 : vector<16xf32> to vector<16x1xf32>
    %cst_68 = arith.constant 3.200000e+01 : f32
    %146 = vector.broadcast %cst_68 : f32 to vector<16x1xf32>
    %147 = arith.divf %145, %146 : vector<16x1xf32>
    %148 = vector.broadcast %140 : vector<16x1xf32> to vector<16x32xf32>
    %149 = arith.subf %134, %148 : vector<16x32xf32>
    %cst_69 = arith.constant 9.99999974E-6 : f32
    %150 = vector.broadcast %cst_69 : f32 to vector<16x1xf32>
    %151 = arith.addf %147, %150 : vector<16x1xf32>
    %152 = math.rsqrt %151 : vector<16x1xf32>
    %153 = vector.broadcast %152 : vector<16x1xf32> to vector<16x32xf32>
    %154 = arith.mulf %149, %153 : vector<16x32xf32>
    %155 = vector.broadcast %135 : vector<1x32xf32> to vector<16x32xf32>
    %156 = arith.mulf %154, %155 : vector<16x32xf32>
    %157 = vector.broadcast %136 : vector<1x32xf32> to vector<16x32xf32>
    %158 = arith.addf %156, %157 : vector<16x32xf32>
    %c0_70 = arith.constant 0 : index
    %c0_71 = arith.constant 0 : index
    %159 = vector.load %arg8[%c0_70, %c0_71] : memref<32x128xf32, #tpu.memory_space<vmem>>, vector<32x128xf32>
    %cst_72 = arith.constant dense<0.000000e+00> : vector<16x128xf32>
    %160 = tpu.matmul %158, %159, %cst_72 {dimension_numbers = #tpu.dot_dimension_numbers<[1], [0], [0], [1], [0, 0, 1, 1], [], []>} : vector<16x32xf32>, vector<32x128xf32>, vector<16x128xf32> -> vector<16x128xf32>
    %c0_73 = arith.constant 0 : index
    %c0_74 = arith.constant 0 : index
    %161 = vector.load %arg9[%c0_73, %c0_74] : memref<1x128xf32, #tpu.memory_space<vmem>>, vector<1x128xf32>
    %162 = vector.broadcast %161 : vector<1x128xf32> to vector<16x128xf32>
    %163 = arith.addf %160, %162 : vector<16x128xf32>
    %cst_75 = arith.constant 0.000000e+00 : f32
    %164 = vector.broadcast %cst_75 : f32 to vector<16x128xf32>
    %165 = arith.maximumf %163, %164 : vector<16x128xf32>
    %c0_76 = arith.constant 0 : index
    %c0_77 = arith.constant 0 : index
    %166 = vector.load %arg10[%c0_76, %c0_77] : memref<128x32xf32, #tpu.memory_space<vmem>>, vector<128x32xf32>
    %cst_78 = arith.constant dense<0.000000e+00> : vector<16x32xf32>
    %167 = tpu.matmul %165, %166, %cst_78 {dimension_numbers = #tpu.dot_dimension_numbers<[1], [0], [0], [1], [0, 0, 1, 1], [], []>} : vector<16x128xf32>, vector<128x32xf32>, vector<16x32xf32> -> vector<16x32xf32>
    %c0_79 = arith.constant 0 : index
    %c0_80 = arith.constant 0 : index
    %168 = vector.load %arg11[%c0_79, %c0_80] : memref<1x32xf32, #tpu.memory_space<vmem>>, vector<1x32xf32>
    %169 = vector.broadcast %168 : vector<1x32xf32> to vector<16x32xf32>
    %170 = arith.addf %167, %169 : vector<16x32xf32>
    %171 = arith.addf %134, %170 : vector<16x32xf32>
    %c0_81 = arith.constant 0 : index
    %c0_82 = arith.constant 0 : index
    %172 = vector.load %arg12[%c0_81, %c0_82] : memref<16x32xf32, #tpu.memory_space<vmem>>, vector<16x32xf32>
    tpu.vector_store %arg12[%c0_81, %c0_82], %171 {strides = array<i32>} : memref<16x32xf32, #tpu.memory_space<vmem>>, vector<16x32xf32>,
    return
  }
}

</mosaic_0001>

<llo_original>
// kernel: transformer_block.1
$region0: #{transformer_block.1}
  #allocation0 [shape = 'u32[]', space=smem, size = 0x4, offset = 0x4, fixed_abs, tag = 'smem constant byte address 0x4 - core index']
  #allocation1 [shape = 'u32[144,128]{1,0:T(1,128)}', space=vmem, size = 0x12000, scoped, tag = 'internal scratch']
  %s0 = inlined_call_operand.vmem [shape: f32[16,32], index: 0, kind: input, shape index: {}]
  %s1 = inlined_call_operand.vmem [shape: f32[1,32], index: 1, kind: input, shape index: {}]
  %s2 = inlined_call_operand.vmem [shape: f32[1,32], index: 2, kind: input, shape index: {}]
  %s3 = inlined_call_operand.vmem [shape: f32[4,32,32], index: 3, kind: input, shape index: {}]
  %s4 = inlined_call_operand.vmem [shape: f32[4,32,32], index: 4, kind: input, shape index: {}]
  %s5 = inlined_call_operand.vmem [shape: f32[1,32], index: 5, kind: input, shape index: {}]
  %s6 = inlined_call_operand.vmem [shape: f32[1,32], index: 6, kind: input, shape index: {}]
  %s7 = inlined_call_operand.vmem [shape: f32[1,32], index: 7, kind: input, shape index: {}]
  %s8 = inlined_call_operand.vmem [shape: f32[32,128], index: 8, kind: input, shape index: {}]
  %s9 = inlined_call_operand.vmem [shape: f32[1,128], index: 9, kind: input, shape index: {}]
  %s10 = inlined_call_operand.vmem [shape: f32[128,32], index: 10, kind: input, shape index: {}]
  %s11 = inlined_call_operand.vmem [shape: f32[1,32], index: 11, kind: input, shape index: {}]
  %s12 = inlined_call_operand.hbm [shape: f32[16,32], index: 12, kind: output, shape index: {}]
  %s13 = sld [smem:[#allocation0]]
  $region58: #{transformer_block.1} parent=0
    _
  %s15 = ssub.s32 1, %s13
  %s16 = scalar_select 0, %s15, %s13
  $region1: #{transformer_block.1} parent=0
    #allocation2 [shape = 'u8[8192]{0}', space=vmem, size = 0x2000, scoped, tag = 'output window, operand 0, single buffered']
    #allocation3 [shape = 's32[1]{0}', space=sflag, size = 0x4, scoped, tag = 'scoped memory for transformer_block.1']
    %17 = vsyncpa [#allocation3], 0
    // Predicated region
    $region2: #{transformer_block.1} parent=1 // pred_check
      _
    $region3: #{transformer_block.1} parent=1 // pred_check_branch
      %19 = sbr.rel (0) target = $region5
    $region4: #{transformer_block.1} parent=1 // pred_region
      _
    $region5: #{transformer_block.1} parent=1 // pred_fallthru
      _
    // Predicated region
    $region6: #{transformer_block.1} parent=1 // pred_check
      _
    $region7: #{transformer_block.1} parent=1 // pred_check_branch
      %21 = sbr.rel (0) target = $region9
    $region8: #{transformer_block.1} parent=1 // pred_region
      _
    $region9: #{transformer_block.1} parent=1 // pred_fallthru
      _
    // Predicated region
    $region10: #{transformer_block.1} parent=1 // pred_check
      _
    $region11: #{transformer_block.1} parent=1 // pred_check_branch
      %23 = sbr.rel (0) target = $region13
    $region12: #{transformer_block.1} parent=1 // pred_region
      _
    $region13: #{transformer_block.1} parent=1 // pred_fallthru
      _
    // Predicated region
    $region14: #{transformer_block.1} parent=1 // pred_check
      _
    $region15: #{transformer_block.1} parent=1 // pred_check_branch
      %25 = sbr.rel (0) target = $region17
    $region16: #{transformer_block.1} parent=1 // pred_region
      _
    $region17: #{transformer_block.1} parent=1 // pred_fallthru
      _
    // Predicated region
    $region18: #{transformer_block.1} parent=1 // pred_check
      _
    $region19: #{transformer_block.1} parent=1 // pred_check_branch
      %27 = sbr.rel (0) target = $region21
    $region20: #{transformer_block.1} parent=1 // pred_region
      _
    $region21: #{transformer_block.1} parent=1 // pred_fallthru
      _
    // Predicated region
    $region22: #{transformer_block.1} parent=1 // pred_check
      _
    $region23: #{transformer_block.1} parent=1 // pred_check_branch
      %29 = sbr.rel (0) target = $region25
    $region24: #{transformer_block.1} parent=1 // pred_region
      _
    $region25: #{transformer_block.1} parent=1 // pred_fallthru
      _
    // Predicated region
    $region26: #{transformer_block.1} parent=1 // pred_check
      _
    $region27: #{transformer_block.1} parent=1 // pred_check_branch
      %31 = sbr.rel (0) target = $region29
    $region28: #{transformer_block.1} parent=1 // pred_region
      _
    $region29: #{transformer_block.1} parent=1 // pred_fallthru
      _
    // Predicated region
    $region30: #{transformer_block.1} parent=1 // pred_check
      _
    $region31: #{transformer_block.1} parent=1 // pred_check_branch
      %33 = sbr.rel (0) target = $region33
    $region32: #{transformer_block.1} parent=1 // pred_region
      _
    $region33: #{transformer_block.1} parent=1 // pred_fallthru
      _
    // Predicated region
    $region34: #{transformer_block.1} parent=1 // pred_check
      _
    $region35: #{transformer_block.1} parent=1 // pred_check_branch
      %35 = sbr.rel (0) target = $region37
    $region36: #{transformer_block.1} parent=1 // pred_region
      _
    $region37: #{transformer_block.1} parent=1 // pred_fallthru
      _
    // Predicated region
    $region38: #{transformer_block.1} parent=1 // pred_check
      _
    $region39: #{transformer_block.1} parent=1 // pred_check_branch
      %37 = sbr.rel (0) target = $region41
    $region40: #{transformer_block.1} parent=1 // pred_region
      _
    $region41: #{transformer_block.1} parent=1 // pred_fallthru
      _
    // Predicated region
    $region42: #{transformer_block.1} parent=1 // pred_check
      _
    $region43: #{transformer_block.1} parent=1 // pred_check_branch
      %39 = sbr.rel (0) target = $region45
    $region44: #{transformer_block.1} parent=1 // pred_region
      _
    $region45: #{transformer_block.1} parent=1 // pred_fallthru
      _
    // Predicated region
    $region46: #{transformer_block.1} parent=1 // pred_check
      _
    $region47: #{transformer_block.1} parent=1 // pred_check_branch
      %41 = sbr.rel (0) target = $region49
    $region48: #{transformer_block.1} parent=1 // pred_region
      _
    $region49: #{transformer_block.1} parent=1 // pred_fallthru
      _
    %v42 = vld [vmem:[%s0] sm:$0xff]
    %v43 = vld [vmem:[%s0 + $0x8] sm:$0xff]
    %v44 = vld [vmem:[%s1] sm:$0x1]
    %v45 = vld [vmem:[%s2] sm:$0x1]
    %vm46 = vcmask 261120
    %v47 = vsel %vm46, %v42, 0.0
    %48 = vadd.xlane.f32.xlu0 %v47
    %v49 = vpop.xlane.xlu0 %48
    %v50 = vsel %vm46, %v43, 0.0
    %51 = vadd.xlane.f32.xlu0 %v50
    %v52 = vpop.xlane.xlu0 %51
    %v53 = vrcp.pop 32.0
    %v54 = vmul.f32 %v49, %v53
    %v55 = vmul.f32 %v52, %v53
    %v56 = vsub.f32 %v42, %v54
    %v57 = vsub.f32 %v43, %v55
    %v58 = vmul.f32 %v56, %v56
    %v59 = vmul.f32 %v57, %v57
    %v60 = vsel %vm46, %v58, 0.0
    %61 = vadd.xlane.f32.xlu0 %v60
    %v62 = vpop.xlane.xlu0 %61
    %v63 = vsel %vm46, %v59, 0.0
    %64 = vadd.xlane.f32.xlu0 %v63
    %v65 = vpop.xlane.xlu0 %64
    %v66 = vmul.f32 %v62, %v53
    %v67 = vmul.f32 %v65, %v53
    %v68 = vadd.f32 %v66, 1e-05
    %v69 = vadd.f32 %v67, 1e-05
    %v70 = vrsqrt.pop %v68
    %v71 = vrsqrt.pop %v69
    %v72 = vmul.f32 %v56, %v70
    %v73 = vmul.f32 %v57, %v71
    %v75 = vlaneseq
    %v76 = vshrl.u32 %v75, 7
    %v77 = vsub.s32 0, %v76
    %v78 = vrot.slane %v44, %v77
    %v80 = vmul.f32 %v72, %v78
    %v81 = vmul.f32 %v73, %v78
    %v83 = vlaneseq
    %v84 = vshrl.u32 %v83, 7
    %v85 = vsub.s32 0, %v84
    %v86 = vrot.slane %v45, %v85
    %v88 = vadd.f32 %v80, %v86
    %v89 = vadd.f32 %v81, %v86
    %v90 = vlaneseq
    %v91 = vshrl.u32 %v90, 7
    %v92 = vlaneseq
    %v93 = vand.u32 %v92, 127
    %vm94 = vcmp.ge.s32.totalorder %v91, %v93
    %v95 = vld [vmem:[%s3] sm:$0xff]
    %v96 = vld [vmem:[%s3 + $0x8] sm:$0xff]
    %v97 = vld [vmem:[%s3 + $0x10] sm:$0xff]
    %v98 = vld [vmem:[%s3 + $0x18] sm:$0xff]
    %v100 = vsel %vm46, %v88, 0
    %v103 = vsel %vm46, %v89, 0
    %105 = vmatprep.subr.mxu0 0.0
    %106 = vmatpush1.msra.mxu0 0.0
    %107 = vmatprep.subr.mxu0 0.0
    %108 = vmatpush1.msra.mxu0 0.0
    %109 = vmatprep.subr.mxu0 0.0
    %110 = vmatpush1.msra.mxu0 0.0
    %111 = vmatprep.subr.mxu0 0.0
    %112 = vmatpush1.msra.mxu0 0.0
    %113 = vmatprep.subr.mxu0 0.0
    %114 = vmatpush1.msra.mxu0 0.0
    %115 = vmatprep.subr.mxu0 0.0
    %116 = vmatpush1.msra.mxu0 0.0
    %117 = vmatprep.subr.mxu0 0.0
    %118 = vmatpush1.msra.mxu0 0.0
    %119 = vmatprep.subr.mxu0 0.0
    %120 = vmatpush1.msra.mxu0 0.0
    %121 = vmatprep.subr.mxu0 0.0
    %122 = vmatpush1.msra.mxu0 0.0
    %123 = vmatprep.subr.mxu0 0.0
    %124 = vmatpush1.msra.mxu0 0.0
    %125 = vmatprep.subr.mxu0 0.0
    %126 = vmatpush1.msra.mxu0 0.0
    %127 = vmatprep.subr.mxu0 0.0
    %128 = vmatpush1.msra.mxu0 0.0
    %129 = vmatprep.subr.mxu0 0.0
    %130 = vmatpush1.msra.mxu0 %v98
    %131 = vmatprep.subr.mxu0 0.0
    %132 = vmatpush1.msra.mxu0 %v97
    %133 = vmatprep.subr.mxu0 0.0
    %134 = vmatpush1.msra.mxu0 %v96
    %135 = vmatprep.subr.mxu0 0.0
    %136 = vmatpush1.msra.mxu0 %v95
    %137 = vmatprep.subr.mxu0 0.0
    %138 = vmatpush2.msra.mxu0 0.0
    %139 = vmatprep.subr.mxu0 0.0
    %140 = vmatpush2.msra.mxu0 0.0
    %141 = vmatprep.subr.mxu0 0.0
    %142 = vmatpush2.msra.mxu0 0.0
    %143 = vmatprep.subr.mxu0 0.0
    %144 = vmatpush2.msra.mxu0 0.0
    %145 = vmatprep.subr.mxu0 0.0
    %146 = vmatpush2.msra.mxu0 0.0
    %147 = vmatprep.subr.mxu0 0.0
    %148 = vmatpush2.msra.mxu0 0.0
    %149 = vmatprep.subr.mxu0 0.0
    %150 = vmatpush2.msra.mxu0 0.0
    %151 = vmatprep.subr.mxu0 0.0
    %152 = vmatpush2.msra.mxu0 0.0
    %153 = vmatprep.subr.mxu0 0.0
    %154 = vmatpush2.msra.mxu0 0.0
    %155 = vmatprep.subr.mxu0 0.0
    %156 = vmatpush2.msra.mxu0 0.0
    %157 = vmatprep.subr.mxu0 0.0
    %158 = vmatpush2.msra.mxu0 0.0
    %159 = vmatprep.subr.mxu0 0.0
    %160 = vmatpush2.msra.mxu0 0.0
    %161 = vmatprep.subr.mxu0 0.0
    %162 = vmatpush2.msra.mxu0 0.0
    %163 = vmatprep.subr.mxu0 0.0
    %164 = vmatpush2.msra.mxu0 0.0
    %165 = vmatprep.subr.mxu0 0.0
    %166 = vmatpush2.msra.mxu0 0.0
    %167 = vmatprep.subr.mxu0 0.0
    %168 = vmatpush2.msra.mxu0 0.0
    %169 = vmatprep.mubr.f32.mxu0 0.0
    %170 = vmatmul.mubr.f32.gmra.mxu0 %v100
    %v171 = vpop.f32.mrf.mxu0
    %v172 = vadd.f32 0.0, %v171
    %v173 = vpop.f32.mrf.mxu0
    %174 = vmatprep.mubr.f32.mxu0 0.0
    %175 = vmatmul.mubr.f32.gmra.mxu0 %v103
    %v176 = vpop.f32.mrf.mxu0
    %v177 = vadd.f32 0.0, %v176
    %v178 = vpop.f32.mrf.mxu0
    %179 = vdwg.mxu0
    %v181 = vsel %vm46, %v172, 0
    %183 = vmatprep.subr.mxu0 0.0
    %184 = vmatpush1.xpose.msra.mxu0 0.0
    %185 = vmatprep.subr.mxu0 0.0
    %186 = vmatpush1.xpose.msra.mxu0 0.0
    %187 = vmatprep.subr.mxu0 0.0
    %188 = vmatpush1.xpose.msra.mxu0 0.0
    %189 = vmatprep.subr.mxu0 0.0
    %190 = vmatpush1.xpose.msra.mxu0 0.0
    %191 = vmatprep.subr.mxu0 0.0
    %192 = vmatpush1.xpose.msra.mxu0 0.0
    %193 = vmatprep.subr.mxu0 0.0
    %194 = vmatpush1.xpose.msra.mxu0 0.0
    %195 = vmatprep.subr.mxu0 0.0
    %196 = vmatpush1.xpose.msra.mxu0 0.0
    %197 = vmatprep.subr.mxu0 0.0
    %198 = vmatpush1.xpose.msra.mxu0 0.0
    %199 = vmatprep.subr.mxu0 0.0
    %200 = vmatpush1.xpose.msra.mxu0 0.0
    %201 = vmatprep.subr.mxu0 0.0
    %202 = vmatpush1.xpose.msra.mxu0 0.0
    %203 = vmatprep.subr.mxu0 0.0
    %204 = vmatpush1.xpose.msra.mxu0 0.0
    %205 = vmatprep.subr.mxu0 0.0
    %206 = vmatpush1.xpose.msra.mxu0 0.0
    %207 = vmatprep.subr.mxu0 0.0
    %208 = vmatpush1.xpose.msra.mxu0 0.0
    %209 = vmatprep.subr.mxu0 0.0
    %210 = vmatpush1.xpose.msra.mxu0 0.0
    %211 = vmatprep.subr.mxu0 0.0
    %212 = vmatpush1.xpose.msra.mxu0 0.0
    %213 = vmatprep.subr.mxu0 0.0
    %214 = vmatpush1.xpose.msra.mxu0 %v100
    %215 = vmatprep.subr.mxu0 0.0
    %216 = vmatpush2.xpose.msra.mxu0 0.0
    %217 = vmatprep.subr.mxu0 0.0
    %218 = vmatpush2.xpose.msra.mxu0 0.0
    %219 = vmatprep.subr.mxu0 0.0
    %220 = vmatpush2.xpose.msra.mxu0 0.0
    %221 = vmatprep.subr.mxu0 0.0
    %222 = vmatpush2.xpose.msra.mxu0 0.0
    %223 = vmatprep.subr.mxu0 0.0
    %224 = vmatpush2.xpose.msra.mxu0 0.0
    %225 = vmatprep.subr.mxu0 0.0
    %226 = vmatpush2.xpose.msra.mxu0 0.0
    %227 = vmatprep.subr.mxu0 0.0
    %228 = vmatpush2.xpose.msra.mxu0 0.0
    %229 = vmatprep.subr.mxu0 0.0
    %230 = vmatpush2.xpose.msra.mxu0 0.0
    %231 = vmatprep.subr.mxu0 0.0
    %232 = vmatpush2.xpose.msra.mxu0 0.0
    %233 = vmatprep.subr.mxu0 0.0
    %234 = vmatpush2.xpose.msra.mxu0 0.0
    %235 = vmatprep.subr.mxu0 0.0
    %236 = vmatpush2.xpose.msra.mxu0 0.0
    %237 = vmatprep.subr.mxu0 0.0
    %238 = vmatpush2.xpose.msra.mxu0 0.0
    %239 = vmatprep.subr.mxu0 0.0
    %240 = vmatpush2.xpose.msra.mxu0 0.0
    %241 = vmatprep.subr.mxu0 0.0
    %242 = vmatpush2.xpose.msra.mxu0 0.0
    %243 = vmatprep.subr.mxu0 0.0
    %244 = vmatpush2.xpose.msra.mxu0 0.0
    %245 = vmatprep.subr.mxu0 0.0
    %246 = vmatpush2.xpose.msra.mxu0 0.0
    %247 = vmatprep.mubr.f32.mxu0 0.0
    %248 = vmatmul.mubr.f32.gmra.mxu0 %v181
    %v249 = vpop.f32.mrf.mxu0
    %v250 = vadd.f32 0.0, %v249
    %v251 = vpop.f32.mrf.mxu0
    %252 = vdwg.mxu0
    %v254 = vsel %vm46, %v177, 0
    %256 = vmatprep.subr.mxu0 0.0
    %257 = vmatpush1.xpose.msra.mxu0 0.0
    %258 = vmatprep.subr.mxu0 0.0
    %259 = vmatpush1.xpose.msra.mxu0 0.0
    %260 = vmatprep.subr.mxu0 0.0
    %261 = vmatpush1.xpose.msra.mxu0 0.0
    %262 = vmatprep.subr.mxu0 0.0
    %263 = vmatpush1.xpose.msra.mxu0 0.0
    %264 = vmatprep.subr.mxu0 0.0
    %265 = vmatpush1.xpose.msra.mxu0 0.0
    %266 = vmatprep.subr.mxu0 0.0
    %267 = vmatpush1.xpose.msra.mxu0 0.0
    %268 = vmatprep.subr.mxu0 0.0
    %269 = vmatpush1.xpose.msra.mxu0 0.0
    %270 = vmatprep.subr.mxu0 0.0
    %271 = vmatpush1.xpose.msra.mxu0 0.0
    %272 = vmatprep.subr.mxu0 0.0
    %273 = vmatpush1.xpose.msra.mxu0 0.0
    %274 = vmatprep.subr.mxu0 0.0
    %275 = vmatpush1.xpose.msra.mxu0 0.0
    %276 = vmatprep.subr.mxu0 0.0
    %277 = vmatpush1.xpose.msra.mxu0 0.0
    %278 = vmatprep.subr.mxu0 0.0
    %279 = vmatpush1.xpose.msra.mxu0 0.0
    %280 = vmatprep.subr.mxu0 0.0
    %281 = vmatpush1.xpose.msra.mxu0 0.0
    %282 = vmatprep.subr.mxu0 0.0
    %283 = vmatpush1.xpose.msra.mxu0 0.0
    %284 = vmatprep.subr.mxu0 0.0
    %285 = vmatpush1.xpose.msra.mxu0 0.0
    %286 = vmatprep.subr.mxu0 0.0
    %287 = vmatpush1.xpose.msra.mxu0 %v103
    %288 = vmatprep.subr.mxu0 0.0
    %289 = vmatpush2.xpose.msra.mxu0 0.0
    %290 = vmatprep.subr.mxu0 0.0
    %291 = vmatpush2.xpose.msra.mxu0 0.0
    %292 = vmatprep.subr.mxu0 0.0
    %293 = vmatpush2.xpose.msra.mxu0 0.0
    %294 = vmatprep.subr.mxu0 0.0
    %295 = vmatpush2.xpose.msra.mxu0 0.0
    %296 = vmatprep.subr.mxu0 0.0
    %297 = vmatpush2.xpose.msra.mxu0 0.0
    %298 = vmatprep.subr.mxu0 0.0
    %299 = vmatpush2.xpose.msra.mxu0 0.0
    %300 = vmatprep.subr.mxu0 0.0
    %301 = vmatpush2.xpose.msra.mxu0 0.0
    %302 = vmatprep.subr.mxu0 0.0
    %303 = vmatpush2.xpose.msra.mxu0 0.0
    %304 = vmatprep.subr.mxu0 0.0
    %305 = vmatpush2.xpose.msra.mxu0 0.0
    %306 = vmatprep.subr.mxu0 0.0
    %307 = vmatpush2.xpose.msra.mxu0 0.0
    %308 = vmatprep.subr.mxu0 0.0
    %309 = vmatpush2.xpose.msra.mxu0 0.0
    %310 = vmatprep.subr.mxu0 0.0
    %311 = vmatpush2.xpose.msra.mxu0 0.0
    %312 = vmatprep.subr.mxu0 0.0
    %313 = vmatpush2.xpose.msra.mxu0 0.0
    %314 = vmatprep.subr.mxu0 0.0
    %315 = vmatpush2.xpose.msra.mxu0 0.0
    %316 = vmatprep.subr.mxu0 0.0
    %317 = vmatpush2.xpose.msra.mxu0 0.0
    %318 = vmatprep.subr.mxu0 0.0
    %319 = vmatpush2.xpose.msra.mxu0 0.0
    %320 = vmatprep.mubr.f32.mxu0 0.0
    %321 = vmatmul.mubr.f32.gmra.mxu0 %v254
    %v322 = vpop.f32.mrf.mxu0
    %v323 = vadd.f32 0.0, %v322
    %v324 = vpop.f32.mrf.mxu0
    %325 = vdwg.mxu0
    %v326 = vsel %vm94, 1, 0
    %vm327 = vcmp.eq.s32.totalorder %v326, 1
    %v328 = vsel %vm327, %v250, -1e+30
    %v329 = vsel %vm327, %v323, -1e+30
    %vm330 = vcmask 64512
    %v331 = vsel %vm330, %v328, -inf
    %332 = vmax.xlane.f32.xlu0 %v331
    %v333 = vpop.xlane.xlu0 %332
    %v334 = vsel %vm330, %v329, -inf
    %335 = vmax.xlane.f32.xlu0 %v334
    %v336 = vpop.xlane.xlu0 %335
    %v337 = vsub.f32 %v328, %v333
    %v338 = vsub.f32 %v329, %v336
    %v339 = vmul.f32 %v337, 1.442695
    %v340 = vpow.pop %v339
    %v341 = vmul.f32 %v338, 1.442695
    %v342 = vpow.pop %v341
    %v343 = vsel %vm330, %v340, 0.0
    %344 = vadd.xlane.f32.xlu0 %v343
    %v345 = vpop.xlane.xlu0 %344
    %v346 = vsel %vm330, %v342, 0.0
    %347 = vadd.xlane.f32.xlu0 %v346
    %v348 = vpop.xlane.xlu0 %347
    %v349 = vrcp.pop %v345
    %v350 = vrcp.pop %v348
    %v351 = vmul.f32 %v340, %v349
    %v352 = vmul.f32 %v342, %v350
    %v353 = vld [vmem:[%s4] sm:$0xff]
    %v354 = vld [vmem:[%s4 + $0x8] sm:$0xff]
    %v355 = vld [vmem:[%s4 + $0x10] sm:$0xff]
    %v356 = vld [vmem:[%s4 + $0x18] sm:$0xff]
    %357 = vmatprep.subr.mxu0 0.0
    %358 = vmatpush1.msra.mxu0 0.0
    %359 = vmatprep.subr.mxu0 0.0
    %360 = vmatpush1.msra.mxu0 0.0
    %361 = vmatprep.subr.mxu0 0.0
    %362 = vmatpush1.msra.mxu0 0.0
    %363 = vmatprep.subr.mxu0 0.0
    %364 = vmatpush1.msra.mxu0 0.0
    %365 = vmatprep.subr.mxu0 0.0
    %366 = vmatpush1.msra.mxu0 0.0
    %367 = vmatprep.subr.mxu0 0.0
    %368 = vmatpush1.msra.mxu0 0.0
    %369 = vmatprep.subr.mxu0 0.0
    %370 = vmatpush1.msra.mxu0 0.0
    %371 = vmatprep.subr.mxu0 0.0
    %372 = vmatpush1.msra.mxu0 0.0
    %373 = vmatprep.subr.mxu0 0.0
    %374 = vmatpush1.msra.mxu0 0.0
    %375 = vmatprep.subr.mxu0 0.0
    %376 = vmatpush1.msra.mxu0 0.0
    %377 = vmatprep.subr.mxu0 0.0
    %378 = vmatpush1.msra.mxu0 0.0
    %379 = vmatprep.subr.mxu0 0.0
    %380 = vmatpush1.msra.mxu0 0.0
    %381 = vmatprep.subr.mxu0 0.0
    %382 = vmatpush1.msra.mxu0 %v356
    %383 = vmatprep.subr.mxu0 0.0
    %384 = vmatpush1.msra.mxu0 %v355
    %385 = vmatprep.subr.mxu0 0.0
    %386 = vmatpush1.msra.mxu0 %v354
    %387 = vmatprep.subr.mxu0 0.0
    %388 = vmatpush1.msra.mxu0 %v353
    %389 = vmatprep.subr.mxu0 0.0
    %390 = vmatpush2.msra.mxu0 0.0
    %391 = vmatprep.subr.mxu0 0.0
    %392 = vmatpush2.msra.mxu0 0.0
    %393 = vmatprep.subr.mxu0 0.0
    %394 = vmatpush2.msra.mxu0 0.0
    %395 = vmatprep.subr.mxu0 0.0
    %396 = vmatpush2.msra.mxu0 0.0
    %397 = vmatprep.subr.mxu0 0.0
    %398 = vmatpush2.msra.mxu0 0.0
    %399 = vmatprep.subr.mxu0 0.0
    %400 = vmatpush2.msra.mxu0 0.0
    %401 = vmatprep.subr.mxu0 0.0
    %402 = vmatpush2.msra.mxu0 0.0
    %403 = vmatprep.subr.mxu0 0.0
    %404 = vmatpush2.msra.mxu0 0.0
    %405 = vmatprep.subr.mxu0 0.0
    %406 = vmatpush2.msra.mxu0 0.0
    %407 = vmatprep.subr.mxu0 0.0
    %408 = vmatpush2.msra.mxu0 0.0
    %409 = vmatprep.subr.mxu0 0.0
    %410 = vmatpush2.msra.mxu0 0.0
    %411 = vmatprep.subr.mxu0 0.0
    %412 = vmatpush2.msra.mxu0 0.0
    %413 = vmatprep.subr.mxu0 0.0
    %414 = vmatpush2.msra.mxu0 0.0
    %415 = vmatprep.subr.mxu0 0.0
    %416 = vmatpush2.msra.mxu0 0.0
    %417 = vmatprep.subr.mxu0 0.0
    %418 = vmatpush2.msra.mxu0 0.0
    %419 = vmatprep.subr.mxu0 0.0
    %420 = vmatpush2.msra.mxu0 0.0
    %421 = vmatprep.mubr.f32.mxu0 0.0
    %422 = vmatmul.mubr.f32.gmra.mxu0 %v100
    %v423 = vpop.f32.mrf.mxu0
    %v424 = vadd.f32 0.0, %v423
    %v425 = vpop.f32.mrf.mxu0
    %426 = vmatprep.mubr.f32.mxu0 0.0
    %427 = vmatmul.mubr.f32.gmra.mxu0 %v103
    %v428 = vpop.f32.mrf.mxu0
    %v429 = vadd.f32 0.0, %v428
    %v430 = vpop.f32.mrf.mxu0
    %431 = vdwg.mxu0
    %s432 = scalar_lea.vmem %s3, 32
    %v433 = vld [vmem:[%s432] sm:$0xff]
    %v434 = vld [vmem:[%s432 + $0x8] sm:$0xff]
    %v435 = vld [vmem:[%s432 + $0x10] sm:$0xff]
    %v436 = vld [vmem:[%s432 + $0x18] sm:$0xff]
    %437 = vmatprep.subr.mxu0 0.0
    %438 = vmatpush1.msra.mxu0 0.0
    %439 = vmatprep.subr.mxu0 0.0
    %440 = vmatpush1.msra.mxu0 0.0
    %441 = vmatprep.subr.mxu0 0.0
    %442 = vmatpush1.msra.mxu0 0.0
    %443 = vmatprep.subr.mxu0 0.0
    %444 = vmatpush1.msra.mxu0 0.0
    %445 = vmatprep.subr.mxu0 0.0
    %446 = vmatpush1.msra.mxu0 0.0
    %447 = vmatprep.subr.mxu0 0.0
    %448 = vmatpush1.msra.mxu0 0.0
    %449 = vmatprep.subr.mxu0 0.0
    %450 = vmatpush1.msra.mxu0 0.0
    %451 = vmatprep.subr.mxu0 0.0
    %452 = vmatpush1.msra.mxu0 0.0
    %453 = vmatprep.subr.mxu0 0.0
    %454 = vmatpush1.msra.mxu0 0.0
    %455 = vmatprep.subr.mxu0 0.0
    %456 = vmatpush1.msra.mxu0 0.0
    %457 = vmatprep.subr.mxu0 0.0
    %458 = vmatpush1.msra.mxu0 0.0
    %459 = vmatprep.subr.mxu0 0.0
    %460 = vmatpush1.msra.mxu0 0.0
    %461 = vmatprep.subr.mxu0 0.0
    %462 = vmatpush1.msra.mxu0 %v436
    %463 = vmatprep.subr.mxu0 0.0
    %464 = vmatpush1.msra.mxu0 %v435
    %465 = vmatprep.subr.mxu0 0.0
    %466 = vmatpush1.msra.mxu0 %v434
    %467 = vmatprep.subr.mxu0 0.0
    %468 = vmatpush1.msra.mxu0 %v433
    %469 = vmatprep.subr.mxu0 0.0
    %470 = vmatpush2.msra.mxu0 0.0
    %471 = vmatprep.subr.mxu0 0.0
    %472 = vmatpush2.msra.mxu0 0.0
    %473 = vmatprep.subr.mxu0 0.0
    %474 = vmatpush2.msra.mxu0 0.0
    %475 = vmatprep.subr.mxu0 0.0
    %476 = vmatpush2.msra.mxu0 0.0
    %477 = vmatprep.subr.mxu0 0.0
    %478 = vmatpush2.msra.mxu0 0.0
    %479 = vmatprep.subr.mxu0 0.0
    %480 = vmatpush2.msra.mxu0 0.0
    %481 = vmatprep.subr.mxu0 0.0
    %482 = vmatpush2.msra.mxu0 0.0
    %483 = vmatprep.subr.mxu0 0.0
    %484 = vmatpush2.msra.mxu0 0.0
    %485 = vmatprep.subr.mxu0 0.0
    %486 = vmatpush2.msra.mxu0 0.0
    %487 = vmatprep.subr.mxu0 0.0
    %488 = vmatpush2.msra.mxu0 0.0
    %489 = vmatprep.subr.mxu0 0.0
    %490 = vmatpush2.msra.mxu0 0.0
    %491 = vmatprep.subr.mxu0 0.0
    %492 = vmatpush2.msra.mxu0 0.0
    %493 = vmatprep.subr.mxu0 0.0
    %494 = vmatpush2.msra.mxu0 0.0
    %495 = vmatprep.subr.mxu0 0.0
    %496 = vmatpush2.msra.mxu0 0.0
    %497 = vmatprep.subr.mxu0 0.0
    %498 = vmatpush2.msra.mxu0 0.0
    %499 = vmatprep.subr.mxu0 0.0
    %500 = vmatpush2.msra.mxu0 0.0
    %501 = vmatprep.mubr.f32.mxu0 0.0
    %502 = vmatmul.mubr.f32.gmra.mxu0 %v100
    %v503 = vpop.f32.mrf.mxu0
    %v504 = vadd.f32 0.0, %v503
    %v505 = vpop.f32.mrf.mxu0
    %506 = vmatprep.mubr.f32.mxu0 0.0
    %507 = vmatmul.mubr.f32.gmra.mxu0 %v103
    %v508 = vpop.f32.mrf.mxu0
    %v509 = vadd.f32 0.0, %v508
    %v510 = vpop.f32.mrf.mxu0
    %511 = vdwg.mxu0
    %v513 = vsel %vm46, %v504, 0
    %515 = vmatprep.subr.mxu0 0.0
    %516 = vmatpush1.xpose.msra.mxu0 0.0
    %517 = vmatprep.subr.mxu0 0.0
    %518 = vmatpush1.xpose.msra.mxu0 0.0
    %519 = vmatprep.subr.mxu0 0.0
    %520 = vmatpush1.xpose.msra.mxu0 0.0
    %521 = vmatprep.subr.mxu0 0.0
    %522 = vmatpush1.xpose.msra.mxu0 0.0
    %523 = vmatprep.subr.mxu0 0.0
    %524 = vmatpush1.xpose.msra.mxu0 0.0
    %525 = vmatprep.subr.mxu0 0.0
    %526 = vmatpush1.xpose.msra.mxu0 0.0
    %527 = vmatprep.subr.mxu0 0.0
    %528 = vmatpush1.xpose.msra.mxu0 0.0
    %529 = vmatprep.subr.mxu0 0.0
    %530 = vmatpush1.xpose.msra.mxu0 0.0
    %531 = vmatprep.subr.mxu0 0.0
    %532 = vmatpush1.xpose.msra.mxu0 0.0
    %533 = vmatprep.subr.mxu0 0.0
    %534 = vmatpush1.xpose.msra.mxu0 0.0
    %535 = vmatprep.subr.mxu0 0.0
    %536 = vmatpush1.xpose.msra.mxu0 0.0
    %537 = vmatprep.subr.mxu0 0.0
    %538 = vmatpush1.xpose.msra.mxu0 0.0
    %539 = vmatprep.subr.mxu0 0.0
    %540 = vmatpush1.xpose.msra.mxu0 0.0
    %541 = vmatprep.subr.mxu0 0.0
    %542 = vmatpush1.xpose.msra.mxu0 0.0
    %543 = vmatprep.subr.mxu0 0.0
    %544 = vmatpush1.xpose.msra.mxu0 0.0
    %545 = vmatprep.subr.mxu0 0.0
    %546 = vmatpush1.xpose.msra.mxu0 %v100
    %547 = vmatprep.subr.mxu0 0.0
    %548 = vmatpush2.xpose.msra.mxu0 0.0
    %549 = vmatprep.subr.mxu0 0.0
    %550 = vmatpush2.xpose.msra.mxu0 0.0
    %551 = vmatprep.subr.mxu0 0.0
    %552 = vmatpush2.xpose.msra.mxu0 0.0
    %553 = vmatprep.subr.mxu0 0.0
    %554 = vmatpush2.xpose.msra.mxu0 0.0
    %555 = vmatprep.subr.mxu0 0.0
    %556 = vmatpush2.xpose.msra.mxu0 0.0
    %557 = vmatprep.subr.mxu0 0.0
    %558 = vmatpush2.xpose.msra.mxu0 0.0
    %559 = vmatprep.subr.mxu0 0.0
    %560 = vmatpush2.xpose.msra.mxu0 0.0
    %561 = vmatprep.subr.mxu0 0.0
    %562 = vmatpush2.xpose.msra.mxu0 0.0
    %563 = vmatprep.subr.mxu0 0.0
    %564 = vmatpush2.xpose.msra.mxu0 0.0
    %565 = vmatprep.subr.mxu0 0.0
    %566 = vmatpush2.xpose.msra.mxu0 0.0
    %567 = vmatprep.subr.mxu0 0.0
    %568 = vmatpush2.xpose.msra.mxu0 0.0
    %569 = vmatprep.subr.mxu0 0.0
    %570 = vmatpush2.xpose.msra.mxu0 0.0
    %571 = vmatprep.subr.mxu0 0.0
    %572 = vmatpush2.xpose.msra.mxu0 0.0
    %573 = vmatprep.subr.mxu0 0.0
    %574 = vmatpush2.xpose.msra.mxu0 0.0
    %575 = vmatprep.subr.mxu0 0.0
    %576 = vmatpush2.xpose.msra.mxu0 0.0
    %577 = vmatprep.subr.mxu0 0.0
    %578 = vmatpush2.xpose.msra.mxu0 0.0
    %579 = vmatprep.mubr.f32.mxu0 0.0
    %580 = vmatmul.mubr.f32.gmra.mxu0 %v513
    %v581 = vpop.f32.mrf.mxu0
    %v582 = vadd.f32 0.0, %v581
    %v583 = vpop.f32.mrf.mxu0
    %584 = vdwg.mxu0
    %v586 = vsel %vm46, %v509, 0
    %588 = vmatprep.subr.mxu0 0.0
    %589 = vmatpush1.xpose.msra.mxu0 0.0
    %590 = vmatprep.subr.mxu0 0.0
    %591 = vmatpush1.xpose.msra.mxu0 0.0
    %592 = vmatprep.subr.mxu0 0.0
    %593 = vmatpush1.xpose.msra.mxu0 0.0
    %594 = vmatprep.subr.mxu0 0.0
    %595 = vmatpush1.xpose.msra.mxu0 0.0
    %596 = vmatprep.subr.mxu0 0.0
    %597 = vmatpush1.xpose.msra.mxu0 0.0
    %598 = vmatprep.subr.mxu0 0.0
    %599 = vmatpush1.xpose.msra.mxu0 0.0
    %600 = vmatprep.subr.mxu0 0.0
    %601 = vmatpush1.xpose.msra.mxu0 0.0
    %602 = vmatprep.subr.mxu0 0.0
    %603 = vmatpush1.xpose.msra.mxu0 0.0
    %604 = vmatprep.subr.mxu0 0.0
    %605 = vmatpush1.xpose.msra.mxu0 0.0
    %606 = vmatprep.subr.mxu0 0.0
    %607 = vmatpush1.xpose.msra.mxu0 0.0
    %608 = vmatprep.subr.mxu0 0.0
    %609 = vmatpush1.xpose.msra.mxu0 0.0
    %610 = vmatprep.subr.mxu0 0.0
    %611 = vmatpush1.xpose.msra.mxu0 0.0
    %612 = vmatprep.subr.mxu0 0.0
    %613 = vmatpush1.xpose.msra.mxu0 0.0
    %614 = vmatprep.subr.mxu0 0.0
    %615 = vmatpush1.xpose.msra.mxu0 0.0
    %616 = vmatprep.subr.mxu0 0.0
    %617 = vmatpush1.xpose.msra.mxu0 0.0
    %618 = vmatprep.subr.mxu0 0.0
    %619 = vmatpush1.xpose.msra.mxu0 %v103
    %620 = vmatprep.subr.mxu0 0.0
    %621 = vmatpush2.xpose.msra.mxu0 0.0
    %622 = vmatprep.subr.mxu0 0.0
    %623 = vmatpush2.xpose.msra.mxu0 0.0
    %624 = vmatprep.subr.mxu0 0.0
    %625 = vmatpush2.xpose.msra.mxu0 0.0
    %626 = vmatprep.subr.mxu0 0.0
    %627 = vmatpush2.xpose.msra.mxu0 0.0
    %628 = vmatprep.subr.mxu0 0.0
    %629 = vmatpush2.xpose.msra.mxu0 0.0
    %630 = vmatprep.subr.mxu0 0.0
    %631 = vmatpush2.xpose.msra.mxu0 0.0
    %632 = vmatprep.subr.mxu0 0.0
    %633 = vmatpush2.xpose.msra.mxu0 0.0
    %634 = vmatprep.subr.mxu0 0.0
    %635 = vmatpush2.xpose.msra.mxu0 0.0
    %636 = vmatprep.subr.mxu0 0.0
    %637 = vmatpush2.xpose.msra.mxu0 0.0
    %638 = vmatprep.subr.mxu0 0.0
    %639 = vmatpush2.xpose.msra.mxu0 0.0
    %640 = vmatprep.subr.mxu0 0.0
    %641 = vmatpush2.xpose.msra.mxu0 0.0
    %642 = vmatprep.subr.mxu0 0.0
    %643 = vmatpush2.xpose.msra.mxu0 0.0
    %644 = vmatprep.subr.mxu0 0.0
    %645 = vmatpush2.xpose.msra.mxu0 0.0
    %646 = vmatprep.subr.mxu0 0.0
    %647 = vmatpush2.xpose.msra.mxu0 0.0
    %648 = vmatprep.subr.mxu0 0.0
    %649 = vmatpush2.xpose.msra.mxu0 0.0
    %650 = vmatprep.subr.mxu0 0.0
    %651 = vmatpush2.xpose.msra.mxu0 0.0
    %652 = vmatprep.mubr.f32.mxu0 0.0
    %653 = vmatmul.mubr.f32.gmra.mxu0 %v586
    %v654 = vpop.f32.mrf.mxu0
    %v655 = vadd.f32 0.0, %v654
    %v656 = vpop.f32.mrf.mxu0
    %657 = vdwg.mxu0
    %v658 = vsel %vm327, %v582, -1e+30
    %v659 = vsel %vm327, %v655, -1e+30
    %v660 = vsel %vm330, %v658, -inf
    %661 = vmax.xlane.f32.xlu0 %v660
    %v662 = vpop.xlane.xlu0 %661
    %v663 = vsel %vm330, %v659, -inf
    %664 = vmax.xlane.f32.xlu0 %v663
    %v665 = vpop.xlane.xlu0 %664
    %v666 = vsub.f32 %v658, %v662
    %v667 = vsub.f32 %v659, %v665
    %v668 = vmul.f32 %v666, 1.442695
    %v669 = vpow.pop %v668
    %v670 = vmul.f32 %v667, 1.442695
    %v671 = vpow.pop %v670
    %v672 = vsel %vm330, %v669, 0.0
    %673 = vadd.xlane.f32.xlu0 %v672
    %v674 = vpop.xlane.xlu0 %673
    %v675 = vsel %vm330, %v671, 0.0
    %676 = vadd.xlane.f32.xlu0 %v675
    %v677 = vpop.xlane.xlu0 %676
    %v678 = vrcp.pop %v674
    %v679 = vrcp.pop %v677
    %v680 = vmul.f32 %v669, %v678
    %v681 = vmul.f32 %v671, %v679
    %s682 = scalar_lea.vmem %s4, 32
    %v683 = vld [vmem:[%s682] sm:$0xff]
    %v684 = vld [vmem:[%s682 + $0x8] sm:$0xff]
    %v685 = vld [vmem:[%s682 + $0x10] sm:$0xff]
    %v686 = vld [vmem:[%s682 + $0x18] sm:$0xff]
    %687 = vmatprep.subr.mxu0 0.0
    %688 = vmatpush1.msra.mxu0 0.0
    %689 = vmatprep.subr.mxu0 0.0
    %690 = vmatpush1.msra.mxu0 0.0
    %691 = vmatprep.subr.mxu0 0.0
    %692 = vmatpush1.msra.mxu0 0.0
    %693 = vmatprep.subr.mxu0 0.0
    %694 = vmatpush1.msra.mxu0 0.0
    %695 = vmatprep.subr.mxu0 0.0
    %696 = vmatpush1.msra.mxu0 0.0
    %697 = vmatprep.subr.mxu0 0.0
    %698 = vmatpush1.msra.mxu0 0.0
    %699 = vmatprep.subr.mxu0 0.0
    %700 = vmatpush1.msra.mxu0 0.0
    %701 = vmatprep.subr.mxu0 0.0
    %702 = vmatpush1.msra.mxu0 0.0
    %703 = vmatprep.subr.mxu0 0.0
    %704 = vmatpush1.msra.mxu0 0.0
    %705 = vmatprep.subr.mxu0 0.0
    %706 = vmatpush1.msra.mxu0 0.0
    %707 = vmatprep.subr.mxu0 0.0
    %708 = vmatpush1.msra.mxu0 0.0
    %709 = vmatprep.subr.mxu0 0.0
    %710 = vmatpush1.msra.mxu0 0.0
    %711 = vmatprep.subr.mxu0 0.0
    %712 = vmatpush1.msra.mxu0 %v686
    %713 = vmatprep.subr.mxu0 0.0
    %714 = vmatpush1.msra.mxu0 %v685
    %715 = vmatprep.subr.mxu0 0.0
    %716 = vmatpush1.msra.mxu0 %v684
    %717 = vmatprep.subr.mxu0 0.0
    %718 = vmatpush1.msra.mxu0 %v683
    %719 = vmatprep.subr.mxu0 0.0
    %720 = vmatpush2.msra.mxu0 0.0
    %721 = vmatprep.subr.mxu0 0.0
    %722 = vmatpush2.msra.mxu0 0.0
    %723 = vmatprep.subr.mxu0 0.0
    %724 = vmatpush2.msra.mxu0 0.0
    %725 = vmatprep.subr.mxu0 0.0
    %726 = vmatpush2.msra.mxu0 0.0
    %727 = vmatprep.subr.mxu0 0.0
    %728 = vmatpush2.msra.mxu0 0.0
    %729 = vmatprep.subr.mxu0 0.0
    %730 = vmatpush2.msra.mxu0 0.0
    %731 = vmatprep.subr.mxu0 0.0
    %732 = vmatpush2.msra.mxu0 0.0
    %733 = vmatprep.subr.mxu0 0.0
    %734 = vmatpush2.msra.mxu0 0.0
    %735 = vmatprep.subr.mxu0 0.0
    %736 = vmatpush2.msra.mxu0 0.0
    %737 = vmatprep.subr.mxu0 0.0
    %738 = vmatpush2.msra.mxu0 0.0
    %739 = vmatprep.subr.mxu0 0.0
    %740 = vmatpush2.msra.mxu0 0.0
    %741 = vmatprep.subr.mxu0 0.0
    %742 = vmatpush2.msra.mxu0 0.0
    %743 = vmatprep.subr.mxu0 0.0
    %744 = vmatpush2.msra.mxu0 0.0
    %745 = vmatprep.subr.mxu0 0.0
    %746 = vmatpush2.msra.mxu0 0.0
    %747 = vmatprep.subr.mxu0 0.0
    %748 = vmatpush2.msra.mxu0 0.0
    %749 = vmatprep.subr.mxu0 0.0
    %750 = vmatpush2.msra.mxu0 0.0
    %751 = vmatprep.mubr.f32.mxu0 0.0
    %752 = vmatmul.mubr.f32.gmra.mxu0 %v100
    %v753 = vpop.f32.mrf.mxu0
    %v754 = vadd.f32 0.0, %v753
    %v755 = vpop.f32.mrf.mxu0
    %756 = vmatprep.mubr.f32.mxu0 0.0
    %757 = vmatmul.mubr.f32.gmra.mxu0 %v103
    %v758 = vpop.f32.mrf.mxu0
    %v759 = vadd.f32 0.0, %v758
    %v760 = vpop.f32.mrf.mxu0
    %761 = vdwg.mxu0
    %v763 = vsel %vm330, %v680, 0
    %765 = vmatprep.subr.mxu0 0.0
    %766 = vmatpush1.msra.mxu0 0.0
    %767 = vmatprep.subr.mxu0 0.0
    %768 = vmatpush1.msra.mxu0 0.0
    %769 = vmatprep.subr.mxu0 0.0
    %770 = vmatpush1.msra.mxu0 0.0
    %771 = vmatprep.subr.mxu0 0.0
    %772 = vmatpush1.msra.mxu0 0.0
    %773 = vmatprep.subr.mxu0 0.0
    %774 = vmatpush1.msra.mxu0 0.0
    %775 = vmatprep.subr.mxu0 0.0
    %776 = vmatpush1.msra.mxu0 0.0
    %777 = vmatprep.subr.mxu0 0.0
    %778 = vmatpush1.msra.mxu0 0.0
    %779 = vmatprep.subr.mxu0 0.0
    %780 = vmatpush1.msra.mxu0 0.0
    %781 = vmatprep.subr.mxu0 0.0
    %782 = vmatpush1.msra.mxu0 0.0
    %783 = vmatprep.subr.mxu0 0.0
    %784 = vmatpush1.msra.mxu0 0.0
    %785 = vmatprep.subr.mxu0 0.0
    %786 = vmatpush1.msra.mxu0 0.0
    %787 = vmatprep.subr.mxu0 0.0
    %788 = vmatpush1.msra.mxu0 0.0
    %789 = vmatprep.subr.mxu0 0.0
    %790 = vmatpush1.msra.mxu0 0.0
    %791 = vmatprep.subr.mxu0 0.0
    %792 = vmatpush1.msra.mxu0 0.0
    %793 = vmatprep.subr.mxu0 0.0
    %794 = vmatpush1.msra.mxu0 0.0
    %795 = vmatprep.subr.mxu0 0.0
    %796 = vmatpush1.msra.mxu0 %v754
    %797 = vmatprep.subr.mxu0 0.0
    %798 = vmatpush2.msra.mxu0 0.0
    %799 = vmatprep.subr.mxu0 0.0
    %800 = vmatpush2.msra.mxu0 0.0
    %801 = vmatprep.subr.mxu0 0.0
    %802 = vmatpush2.msra.mxu0 0.0
    %803 = vmatprep.subr.mxu0 0.0
    %804 = vmatpush2.msra.mxu0 0.0
    %805 = vmatprep.subr.mxu0 0.0
    %806 = vmatpush2.msra.mxu0 0.0
    %807 = vmatprep.subr.mxu0 0.0
    %808 = vmatpush2.msra.mxu0 0.0
    %809 = vmatprep.subr.mxu0 0.0
    %810 = vmatpush2.msra.mxu0 0.0
    %811 = vmatprep.subr.mxu0 0.0
    %812 = vmatpush2.msra.mxu0 0.0
    %813 = vmatprep.subr.mxu0 0.0
    %814 = vmatpush2.msra.mxu0 0.0
    %815 = vmatprep.subr.mxu0 0.0
    %816 = vmatpush2.msra.mxu0 0.0
    %817 = vmatprep.subr.mxu0 0.0
    %818 = vmatpush2.msra.mxu0 0.0
    %819 = vmatprep.subr.mxu0 0.0
    %820 = vmatpush2.msra.mxu0 0.0
    %821 = vmatprep.subr.mxu0 0.0
    %822 = vmatpush2.msra.mxu0 0.0
    %823 = vmatprep.subr.mxu0 0.0
    %824 = vmatpush2.msra.mxu0 0.0
    %825 = vmatprep.subr.mxu0 0.0
    %826 = vmatpush2.msra.mxu0 0.0
    %827 = vmatprep.subr.mxu0 0.0
    %828 = vmatpush2.msra.mxu0 0.0
    %829 = vmatprep.mubr.f32.mxu0 0.0
    %830 = vmatmul.mubr.f32.gmra.mxu0 %v763
    %v831 = vpop.f32.mrf.mxu0
    %v832 = vadd.f32 0.0, %v831
    %v833 = vpop.f32.mrf.mxu0
    %834 = vdwg.mxu0
    %v836 = vsel %vm330, %v681, 0
    %838 = vmatprep.subr.mxu0 0.0
    %839 = vmatpush1.msra.mxu0 0.0
    %840 = vmatprep.subr.mxu0 0.0
    %841 = vmatpush1.msra.mxu0 0.0
    %842 = vmatprep.subr.mxu0 0.0
    %843 = vmatpush1.msra.mxu0 0.0
    %844 = vmatprep.subr.mxu0 0.0
    %845 = vmatpush1.msra.mxu0 0.0
    %846 = vmatprep.subr.mxu0 0.0
    %847 = vmatpush1.msra.mxu0 0.0
    %848 = vmatprep.subr.mxu0 0.0
    %849 = vmatpush1.msra.mxu0 0.0
    %850 = vmatprep.subr.mxu0 0.0
    %851 = vmatpush1.msra.mxu0 0.0
    %852 = vmatprep.subr.mxu0 0.0
    %853 = vmatpush1.msra.mxu0 0.0
    %854 = vmatprep.subr.mxu0 0.0
    %855 = vmatpush1.msra.mxu0 0.0
    %856 = vmatprep.subr.mxu0 0.0
    %857 = vmatpush1.msra.mxu0 0.0
    %858 = vmatprep.subr.mxu0 0.0
    %859 = vmatpush1.msra.mxu0 0.0
    %860 = vmatprep.subr.mxu0 0.0
    %861 = vmatpush1.msra.mxu0 0.0
    %862 = vmatprep.subr.mxu0 0.0
    %863 = vmatpush1.msra.mxu0 0.0
    %864 = vmatprep.subr.mxu0 0.0
    %865 = vmatpush1.msra.mxu0 0.0
    %866 = vmatprep.subr.mxu0 0.0
    %867 = vmatpush1.msra.mxu0 0.0
    %868 = vmatprep.subr.mxu0 0.0
    %869 = vmatpush1.msra.mxu0 %v759
    %870 = vmatprep.subr.mxu0 0.0
    %871 = vmatpush2.msra.mxu0 0.0
    %872 = vmatprep.subr.mxu0 0.0
    %873 = vmatpush2.msra.mxu0 0.0
    %874 = vmatprep.subr.mxu0 0.0
    %875 = vmatpush2.msra.mxu0 0.0
    %876 = vmatprep.subr.mxu0 0.0
    %877 = vmatpush2.msra.mxu0 0.0
    %878 = vmatprep.subr.mxu0 0.0
    %879 = vmatpush2.msra.mxu0 0.0
    %880 = vmatprep.subr.mxu0 0.0
    %881 = vmatpush2.msra.mxu0 0.0
    %882 = vmatprep.subr.mxu0 0.0
    %883 = vmatpush2.msra.mxu0 0.0
    %884 = vmatprep.subr.mxu0 0.0
    %885 = vmatpush2.msra.mxu0 0.0
    %886 = vmatprep.subr.mxu0 0.0
    %887 = vmatpush2.msra.mxu0 0.0
    %888 = vmatprep.subr.mxu0 0.0
    %889 = vmatpush2.msra.mxu0 0.0
    %890 = vmatprep.subr.mxu0 0.0
    %891 = vmatpush2.msra.mxu0 0.0
    %892 = vmatprep.subr.mxu0 0.0
    %893 = vmatpush2.msra.mxu0 0.0
    %894 = vmatprep.subr.mxu0 0.0
    %895 = vmatpush2.msra.mxu0 0.0
    %896 = vmatprep.subr.mxu0 0.0
    %897 = vmatpush2.msra.mxu0 0.0
    %898 = vmatprep.subr.mxu0 0.0
    %899 = vmatpush2.msra.mxu0 0.0
    %900 = vmatprep.subr.mxu0 0.0
    %901 = vmatpush2.msra.mxu0 0.0
    %902 = vmatprep.mubr.f32.mxu0 0.0
    %903 = vmatmul.mubr.f32.gmra.mxu0 %v836
    %v904 = vpop.f32.mrf.mxu0
    %v905 = vadd.f32 0.0, %v904
    %v906 = vpop.f32.mrf.mxu0
    %907 = vdwg.mxu0
    %v909 = vsel %vm330, %v351, 0
    %911 = vmatprep.subr.mxu0 0.0
    %912 = vmatpush1.msra.mxu0 0.0
    %913 = vmatprep.subr.mxu0 0.0
    %914 = vmatpush1.msra.mxu0 0.0
    %915 = vmatprep.subr.mxu0 0.0
    %916 = vmatpush1.msra.mxu0 0.0
    %917 = vmatprep.subr.mxu0 0.0
    %918 = vmatpush1.msra.mxu0 0.0
    %919 = vmatprep.subr.mxu0 0.0
    %920 = vmatpush1.msra.mxu0 0.0
    %921 = vmatprep.subr.mxu0 0.0
    %922 = vmatpush1.msra.mxu0 0.0
    %923 = vmatprep.subr.mxu0 0.0
    %924 = vmatpush1.msra.mxu0 0.0
    %925 = vmatprep.subr.mxu0 0.0
    %926 = vmatpush1.msra.mxu0 0.0
    %927 = vmatprep.subr.mxu0 0.0
    %928 = vmatpush1.msra.mxu0 0.0
    %929 = vmatprep.subr.mxu0 0.0
    %930 = vmatpush1.msra.mxu0 0.0
    %931 = vmatprep.subr.mxu0 0.0
    %932 = vmatpush1.msra.mxu0 0.0
    %933 = vmatprep.subr.mxu0 0.0
    %934 = vmatpush1.msra.mxu0 0.0
    %935 = vmatprep.subr.mxu0 0.0
    %936 = vmatpush1.msra.mxu0 0.0
    %937 = vmatprep.subr.mxu0 0.0
    %938 = vmatpush1.msra.mxu0 0.0
    %939 = vmatprep.subr.mxu0 0.0
    %940 = vmatpush1.msra.mxu0 0.0
    %941 = vmatprep.subr.mxu0 0.0
    %942 = vmatpush1.msra.mxu0 %v424
    %943 = vmatprep.subr.mxu0 0.0
    %944 = vmatpush2.msra.mxu0 0.0
    %945 = vmatprep.subr.mxu0 0.0
    %946 = vmatpush2.msra.mxu0 0.0
    %947 = vmatprep.subr.mxu0 0.0
    %948 = vmatpush2.msra.mxu0 0.0
    %949 = vmatprep.subr.mxu0 0.0
    %950 = vmatpush2.msra.mxu0 0.0
    %951 = vmatprep.subr.mxu0 0.0
    %952 = vmatpush2.msra.mxu0 0.0
    %953 = vmatprep.subr.mxu0 0.0
    %954 = vmatpush2.msra.mxu0 0.0
    %955 = vmatprep.subr.mxu0 0.0
    %956 = vmatpush2.msra.mxu0 0.0
    %957 = vmatprep.subr.mxu0 0.0
    %958 = vmatpush2.msra.mxu0 0.0
    %959 = vmatprep.subr.mxu0 0.0
    %960 = vmatpush2.msra.mxu0 0.0
    %961 = vmatprep.subr.mxu0 0.0
    %962 = vmatpush2.msra.mxu0 0.0
    %963 = vmatprep.subr.mxu0 0.0
    %964 = vmatpush2.msra.mxu0 0.0
    %965 = vmatprep.subr.mxu0 0.0
    %966 = vmatpush2.msra.mxu0 0.0
    %967 = vmatprep.subr.mxu0 0.0
    %968 = vmatpush2.msra.mxu0 0.0
    %969 = vmatprep.subr.mxu0 0.0
    %970 = vmatpush2.msra.mxu0 0.0
    %971 = vmatprep.subr.mxu0 0.0
    %972 = vmatpush2.msra.mxu0 0.0
    %973 = vmatprep.subr.mxu0 0.0
    %974 = vmatpush2.msra.mxu0 0.0
    %975 = vmatprep.mubr.f32.mxu0 0.0
    %976 = vmatmul.mubr.f32.gmra.mxu0 %v909
    %v977 = vpop.f32.mrf.mxu0
    %v978 = vadd.f32 %v832, %v977
    %v979 = vpop.f32.mrf.mxu0
    %980 = vdwg.mxu0
    %v982 = vsel %vm330, %v352, 0
    %984 = vmatprep.subr.mxu0 0.0
    %985 = vmatpush1.msra.mxu0 0.0
    %986 = vmatprep.subr.mxu0 0.0
    %987 = vmatpush1.msra.mxu0 0.0
    %988 = vmatprep.subr.mxu0 0.0
    %989 = vmatpush1.msra.mxu0 0.0
    %990 = vmatprep.subr.mxu0 0.0
    %991 = vmatpush1.msra.mxu0 0.0
    %992 = vmatprep.subr.mxu0 0.0
    %993 = vmatpush1.msra.mxu0 0.0
    %994 = vmatprep.subr.mxu0 0.0
    %995 = vmatpush1.msra.mxu0 0.0
    %996 = vmatprep.subr.mxu0 0.0
    %997 = vmatpush1.msra.mxu0 0.0
    %998 = vmatprep.subr.mxu0 0.0
    %999 = vmatpush1.msra.mxu0 0.0
    %1000 = vmatprep.subr.mxu0 0.0
    %1001 = vmatpush1.msra.mxu0 0.0
    %1002 = vmatprep.subr.mxu0 0.0
    %1003 = vmatpush1.msra.mxu0 0.0
    %1004 = vmatprep.subr.mxu0 0.0
    %1005 = vmatpush1.msra.mxu0 0.0
    %1006 = vmatprep.subr.mxu0 0.0
    %1007 = vmatpush1.msra.mxu0 0.0
    %1008 = vmatprep.subr.mxu0 0.0
    %1009 = vmatpush1.msra.mxu0 0.0
    %1010 = vmatprep.subr.mxu0 0.0
    %1011 = vmatpush1.msra.mxu0 0.0
    %1012 = vmatprep.subr.mxu0 0.0
    %1013 = vmatpush1.msra.mxu0 0.0
    %1014 = vmatprep.subr.mxu0 0.0
    %1015 = vmatpush1.msra.mxu0 %v429
    %1016 = vmatprep.subr.mxu0 0.0
    %1017 = vmatpush2.msra.mxu0 0.0
    %1018 = vmatprep.subr.mxu0 0.0
    %1019 = vmatpush2.msra.mxu0 0.0
    %1020 = vmatprep.subr.mxu0 0.0
    %1021 = vmatpush2.msra.mxu0 0.0
    %1022 = vmatprep.subr.mxu0 0.0
    %1023 = vmatpush2.msra.mxu0 0.0
    %1024 = vmatprep.subr.mxu0 0.0
    %1025 = vmatpush2.msra.mxu0 0.0
    %1026 = vmatprep.subr.mxu0 0.0
    %1027 = vmatpush2.msra.mxu0 0.0
    %1028 = vmatprep.subr.mxu0 0.0
    %1029 = vmatpush2.msra.mxu0 0.0
    %1030 = vmatprep.subr.mxu0 0.0
    %1031 = vmatpush2.msra.mxu0 0.0
    %1032 = vmatprep.subr.mxu0 0.0
    %1033 = vmatpush2.msra.mxu0 0.0
    %1034 = vmatprep.subr.mxu0 0.0
    %1035 = vmatpush2.msra.mxu0 0.0
    %1036 = vmatprep.subr.mxu0 0.0
    %1037 = vmatpush2.msra.mxu0 0.0
    %1038 = vmatprep.subr.mxu0 0.0
    %1039 = vmatpush2.msra.mxu0 0.0
    %1040 = vmatprep.subr.mxu0 0.0
    %1041 = vmatpush2.msra.mxu0 0.0
    %1042 = vmatprep.subr.mxu0 0.0
    %1043 = vmatpush2.msra.mxu0 0.0
    %1044 = vmatprep.subr.mxu0 0.0
    %1045 = vmatpush2.msra.mxu0 0.0
    %1046 = vmatprep.subr.mxu0 0.0
    %1047 = vmatpush2.msra.mxu0 0.0
    %1048 = vmatprep.mubr.f32.mxu0 0.0
    %1049 = vmatmul.mubr.f32.gmra.mxu0 %v982
    %v1050 = vpop.f32.mrf.mxu0
    %v1051 = vadd.f32 %v905, %v1050
    %v1052 = vpop.f32.mrf.mxu0
    %1053 = vdwg.mxu0
    %s1054 = scalar_lea.vmem %s3, 64
    %v1055 = vld [vmem:[%s1054] sm:$0xff]
    %v1056 = vld [vmem:[%s1054 + $0x8] sm:$0xff]
    %v1057 = vld [vmem:[%s1054 + $0x10] sm:$0xff]
    %v1058 = vld [vmem:[%s1054 + $0x18] sm:$0xff]
    %1059 = vmatprep.subr.mxu0 0.0
    %1060 = vmatpush1.msra.mxu0 0.0
    %1061 = vmatprep.subr.mxu0 0.0
    %1062 = vmatpush1.msra.mxu0 0.0
    %1063 = vmatprep.subr.mxu0 0.0
    %1064 = vmatpush1.msra.mxu0 0.0
    %1065 = vmatprep.subr.mxu0 0.0
    %1066 = vmatpush1.msra.mxu0 0.0
    %1067 = vmatprep.subr.mxu0 0.0
    %1068 = vmatpush1.msra.mxu0 0.0
    %1069 = vmatprep.subr.mxu0 0.0
    %1070 = vmatpush1.msra.mxu0 0.0
    %1071 = vmatprep.subr.mxu0 0.0
    %1072 = vmatpush1.msra.mxu0 0.0
    %1073 = vmatprep.subr.mxu0 0.0
    %1074 = vmatpush1.msra.mxu0 0.0
    %1075 = vmatprep.subr.mxu0 0.0
    %1076 = vmatpush1.msra.mxu0 0.0
    %1077 = vmatprep.subr.mxu0 0.0
    %1078 = vmatpush1.msra.mxu0 0.0
    %1079 = vmatprep.subr.mxu0 0.0
    %1080 = vmatpush1.msra.mxu0 0.0
    %1081 = vmatprep.subr.mxu0 0.0
    %1082 = vmatpush1.msra.mxu0 0.0
    %1083 = vmatprep.subr.mxu0 0.0
    %1084 = vmatpush1.msra.mxu0 %v1058
    %1085 = vmatprep.subr.mxu0 0.0
    %1086 = vmatpush1.msra.mxu0 %v1057
    %1087 = vmatprep.subr.mxu0 0.0
    %1088 = vmatpush1.msra.mxu0 %v1056
    %1089 = vmatprep.subr.mxu0 0.0
    %1090 = vmatpush1.msra.mxu0 %v1055
    %1091 = vmatprep.subr.mxu0 0.0
    %1092 = vmatpush2.msra.mxu0 0.0
    %1093 = vmatprep.subr.mxu0 0.0
    %1094 = vmatpush2.msra.mxu0 0.0
    %1095 = vmatprep.subr.mxu0 0.0
    %1096 = vmatpush2.msra.mxu0 0.0
    %1097 = vmatprep.subr.mxu0 0.0
    %1098 = vmatpush2.msra.mxu0 0.0
    %1099 = vmatprep.subr.mxu0 0.0
    %1100 = vmatpush2.msra.mxu0 0.0
    %1101 = vmatprep.subr.mxu0 0.0
    %1102 = vmatpush2.msra.mxu0 0.0
    %1103 = vmatprep.subr.mxu0 0.0
    %1104 = vmatpush2.msra.mxu0 0.0
    %1105 = vmatprep.subr.mxu0 0.0
    %1106 = vmatpush2.msra.mxu0 0.0
    %1107 = vmatprep.subr.mxu0 0.0
    %1108 = vmatpush2.msra.mxu0 0.0
    %1109 = vmatprep.subr.mxu0 0.0
    %1110 = vmatpush2.msra.mxu0 0.0
    %1111 = vmatprep.subr.mxu0 0.0
    %1112 = vmatpush2.msra.mxu0 0.0
    %1113 = vmatprep.subr.mxu0 0.0
    %1114 = vmatpush2.msra.mxu0 0.0
    %1115 = vmatprep.subr.mxu0 0.0
    %1116 = vmatpush2.msra.mxu0 0.0
    %1117 = vmatprep.subr.mxu0 0.0
    %1118 = vmatpush2.msra.mxu0 0.0
    %1119 = vmatprep.subr.mxu0 0.0
    %1120 = vmatpush2.msra.mxu0 0.0
    %1121 = vmatprep.subr.mxu0 0.0
    %1122 = vmatpush2.msra.mxu0 0.0
    %1123 = vmatprep.mubr.f32.mxu0 0.0
    %1124 = vmatmul.mubr.f32.gmra.mxu0 %v100
    %v1125 = vpop.f32.mrf.mxu0
    %v1126 = vadd.f32 0.0, %v1125
    %v1127 = vpop.f32.mrf.mxu0
    %1128 = vmatprep.mubr.f32.mxu0 0.0
    %1129 = vmatmul.mubr.f32.gmra.mxu0 %v103
    %v1130 = vpop.f32.mrf.mxu0
    %v1131 = vadd.f32 0.0, %v1130
    %v1132 = vpop.f32.mrf.mxu0
    %1133 = vdwg.mxu0
    %v1135 = vsel %vm46, %v1126, 0
    %1137 = vmatprep.subr.mxu0 0.0
    %1138 = vmatpush1.xpose.msra.mxu0 0.0
    %1139 = vmatprep.subr.mxu0 0.0
    %1140 = vmatpush1.xpose.msra.mxu0 0.0
    %1141 = vmatprep.subr.mxu0 0.0
    %1142 = vmatpush1.xpose.msra.mxu0 0.0
    %1143 = vmatprep.subr.mxu0 0.0
    %1144 = vmatpush1.xpose.msra.mxu0 0.0
    %1145 = vmatprep.subr.mxu0 0.0
    %1146 = vmatpush1.xpose.msra.mxu0 0.0
    %1147 = vmatprep.subr.mxu0 0.0
    %1148 = vmatpush1.xpose.msra.mxu0 0.0
    %1149 = vmatprep.subr.mxu0 0.0
    %1150 = vmatpush1.xpose.msra.mxu0 0.0
    %1151 = vmatprep.subr.mxu0 0.0
    %1152 = vmatpush1.xpose.msra.mxu0 0.0
    %1153 = vmatprep.subr.mxu0 0.0
    %1154 = vmatpush1.xpose.msra.mxu0 0.0
    %1155 = vmatprep.subr.mxu0 0.0
    %1156 = vmatpush1.xpose.msra.mxu0 0.0
    %1157 = vmatprep.subr.mxu0 0.0
    %1158 = vmatpush1.xpose.msra.mxu0 0.0
    %1159 = vmatprep.subr.mxu0 0.0
    %1160 = vmatpush1.xpose.msra.mxu0 0.0
    %1161 = vmatprep.subr.mxu0 0.0
    %1162 = vmatpush1.xpose.msra.mxu0 0.0
    %1163 = vmatprep.subr.mxu0 0.0
    %1164 = vmatpush1.xpose.msra.mxu0 0.0
    %1165 = vmatprep.subr.mxu0 0.0
    %1166 = vmatpush1.xpose.msra.mxu0 0.0
    %1167 = vmatprep.subr.mxu0 0.0
    %1168 = vmatpush1.xpose.msra.mxu0 %v100
    %1169 = vmatprep.subr.mxu0 0.0
    %1170 = vmatpush2.xpose.msra.mxu0 0.0
    %1171 = vmatprep.subr.mxu0 0.0
    %1172 = vmatpush2.xpose.msra.mxu0 0.0
    %1173 = vmatprep.subr.mxu0 0.0
    %1174 = vmatpush2.xpose.msra.mxu0 0.0
    %1175 = vmatprep.subr.mxu0 0.0
    %1176 = vmatpush2.xpose.msra.mxu0 0.0
    %1177 = vmatprep.subr.mxu0 0.0
    %1178 = vmatpush2.xpose.msra.mxu0 0.0
    %1179 = vmatprep.subr.mxu0 0.0
    %1180 = vmatpush2.xpose.msra.mxu0 0.0
    %1181 = vmatprep.subr.mxu0 0.0
    %1182 = vmatpush2.xpose.msra.mxu0 0.0
    %1183 = vmatprep.subr.mxu0 0.0
    %1184 = vmatpush2.xpose.msra.mxu0 0.0
    %1185 = vmatprep.subr.mxu0 0.0
    %1186 = vmatpush2.xpose.msra.mxu0 0.0
    %1187 = vmatprep.subr.mxu0 0.0
    %1188 = vmatpush2.xpose.msra.mxu0 0.0
    %1189 = vmatprep.subr.mxu0 0.0
    %1190 = vmatpush2.xpose.msra.mxu0 0.0
    %1191 = vmatprep.subr.mxu0 0.0
    %1192 = vmatpush2.xpose.msra.mxu0 0.0
    %1193 = vmatprep.subr.mxu0 0.0
    %1194 = vmatpush2.xpose.msra.mxu0 0.0
    %1195 = vmatprep.subr.mxu0 0.0
    %1196 = vmatpush2.xpose.msra.mxu0 0.0
    %1197 = vmatprep.subr.mxu0 0.0
    %1198 = vmatpush2.xpose.msra.mxu0 0.0
    %1199 = vmatprep.subr.mxu0 0.0
    %1200 = vmatpush2.xpose.msra.mxu0 0.0
    %1201 = vmatprep.mubr.f32.mxu0 0.0
    %1202 = vmatmul.mubr.f32.gmra.mxu0 %v1135
    %v1203 = vpop.f32.mrf.mxu0
    %v1204 = vadd.f32 0.0, %v1203
    %v1205 = vpop.f32.mrf.mxu0
    %1206 = vdwg.mxu0
    %v1208 = vsel %vm46, %v1131, 0
    %1210 = vmatprep.subr.mxu0 0.0
    %1211 = vmatpush1.xpose.msra.mxu0 0.0
    %1212 = vmatprep.subr.mxu0 0.0
    %1213 = vmatpush1.xpose.msra.mxu0 0.0
    %1214 = vmatprep.subr.mxu0 0.0
    %1215 = vmatpush1.xpose.msra.mxu0 0.0
    %1216 = vmatprep.subr.mxu0 0.0
    %1217 = vmatpush1.xpose.msra.mxu0 0.0
    %1218 = vmatprep.subr.mxu0 0.0
    %1219 = vmatpush1.xpose.msra.mxu0 0.0
    %1220 = vmatprep.subr.mxu0 0.0
    %1221 = vmatpush1.xpose.msra.mxu0 0.0
    %1222 = vmatprep.subr.mxu0 0.0
    %1223 = vmatpush1.xpose.msra.mxu0 0.0
    %1224 = vmatprep.subr.mxu0 0.0
    %1225 = vmatpush1.xpose.msra.mxu0 0.0
    %1226 = vmatprep.subr.mxu0 0.0
    %1227 = vmatpush1.xpose.msra.mxu0 0.0
    %1228 = vmatprep.subr.mxu0 0.0
    %1229 = vmatpush1.xpose.msra.mxu0 0.0
    %1230 = vmatprep.subr.mxu0 0.0
    %1231 = vmatpush1.xpose.msra.mxu0 0.0
    %1232 = vmatprep.subr.mxu0 0.0
    %1233 = vmatpush1.xpose.msra.mxu0 0.0
    %1234 = vmatprep.subr.mxu0 0.0
    %1235 = vmatpush1.xpose.msra.mxu0 0.0
    %1236 = vmatprep.subr.mxu0 0.0
    %1237 = vmatpush1.xpose.msra.mxu0 0.0
    %1238 = vmatprep.subr.mxu0 0.0
    %1239 = vmatpush1.xpose.msra.mxu0 0.0
    %1240 = vmatprep.subr.mxu0 0.0
    %1241 = vmatpush1.xpose.msra.mxu0 %v103
    %1242 = vmatprep.subr.mxu0 0.0
    %1243 = vmatpush2.xpose.msra.mxu0 0.0
    %1244 = vmatprep.subr.mxu0 0.0
    %1245 = vmatpush2.xpose.msra.mxu0 0.0
    %1246 = vmatprep.subr.mxu0 0.0
    %1247 = vmatpush2.xpose.msra.mxu0 0.0
    %1248 = vmatprep.subr.mxu0 0.0
    %1249 = vmatpush2.xpose.msra.mxu0 0.0
    %1250 = vmatprep.subr.mxu0 0.0
    %1251 = vmatpush2.xpose.msra.mxu0 0.0
    %1252 = vmatprep.subr.mxu0 0.0
    %1253 = vmatpush2.xpose.msra.mxu0 0.0
    %1254 = vmatprep.subr.mxu0 0.0
    %1255 = vmatpush2.xpose.msra.mxu0 0.0
    %1256 = vmatprep.subr.mxu0 0.0
    %1257 = vmatpush2.xpose.msra.mxu0 0.0
    %1258 = vmatprep.subr.mxu0 0.0
    %1259 = vmatpush2.xpose.msra.mxu0 0.0
    %1260 = vmatprep.subr.mxu0 0.0
    %1261 = vmatpush2.xpose.msra.mxu0 0.0
    %1262 = vmatprep.subr.mxu0 0.0
    %1263 = vmatpush2.xpose.msra.mxu0 0.0
    %1264 = vmatprep.subr.mxu0 0.0
    %1265 = vmatpush2.xpose.msra.mxu0 0.0
    %1266 = vmatprep.subr.mxu0 0.0
    %1267 = vmatpush2.xpose.msra.mxu0 0.0
    %1268 = vmatprep.subr.mxu0 0.0
    %1269 = vmatpush2.xpose.msra.mxu0 0.0
    %1270 = vmatprep.subr.mxu0 0.0
    %1271 = vmatpush2.xpose.msra.mxu0 0.0
    %1272 = vmatprep.subr.mxu0 0.0
    %1273 = vmatpush2.xpose.msra.mxu0 0.0
    %1274 = vmatprep.mubr.f32.mxu0 0.0
    %1275 = vmatmul.mubr.f32.gmra.mxu0 %v1208
    %v1276 = vpop.f32.mrf.mxu0
    %v1277 = vadd.f32 0.0, %v1276
    %v1278 = vpop.f32.mrf.mxu0
    %1279 = vdwg.mxu0
    %v1280 = vsel %vm327, %v1204, -1e+30
    %v1281 = vsel %vm327, %v1277, -1e+30
    %v1282 = vsel %vm330, %v1280, -inf
    %1283 = vmax.xlane.f32.xlu0 %v1282
    %v1284 = vpop.xlane.xlu0 %1283
    %v1285 = vsel %vm330, %v1281, -inf
    %1286 = vmax.xlane.f32.xlu0 %v1285
    %v1287 = vpop.xlane.xlu0 %1286
    %v1288 = vsub.f32 %v1280, %v1284
    %v1289 = vsub.f32 %v1281, %v1287
    %v1290 = vmul.f32 %v1288, 1.442695
    %v1291 = vpow.pop %v1290
    %v1292 = vmul.f32 %v1289, 1.442695
    %v1293 = vpow.pop %v1292
    %v1294 = vsel %vm330, %v1291, 0.0
    %1295 = vadd.xlane.f32.xlu0 %v1294
    %v1296 = vpop.xlane.xlu0 %1295
    %v1297 = vsel %vm330, %v1293, 0.0
    %1298 = vadd.xlane.f32.xlu0 %v1297
    %v1299 = vpop.xlane.xlu0 %1298
    %v1300 = vrcp.pop %v1296
    %v1301 = vrcp.pop %v1299
    %v1302 = vmul.f32 %v1291, %v1300
    %v1303 = vmul.f32 %v1293, %v1301
    %s1304 = scalar_lea.vmem %s4, 64
    %v1305 = vld [vmem:[%s1304] sm:$0xff]
    %v1306 = vld [vmem:[%s1304 + $0x8] sm:$0xff]
    %v1307 = vld [vmem:[%s1304 + $0x10] sm:$0xff]
    %v1308 = vld [vmem:[%s1304 + $0x18] sm:$0xff]
    %1309 = vmatprep.subr.mxu0 0.0
    %1310 = vmatpush1.msra.mxu0 0.0
    %1311 = vmatprep.subr.mxu0 0.0
    %1312 = vmatpush1.msra.mxu0 0.0
    %1313 = vmatprep.subr.mxu0 0.0
    %1314 = vmatpush1.msra.mxu0 0.0
    %1315 = vmatprep.subr.mxu0 0.0
    %1316 = vmatpush1.msra.mxu0 0.0
    %1317 = vmatprep.subr.mxu0 0.0
    %1318 = vmatpush1.msra.mxu0 0.0
    %1319 = vmatprep.subr.mxu0 0.0
    %1320 = vmatpush1.msra.mxu0 0.0
    %1321 = vmatprep.subr.mxu0 0.0
    %1322 = vmatpush1.msra.mxu0 0.0
    %1323 = vmatprep.subr.mxu0 0.0
    %1324 = vmatpush1.msra.mxu0 0.0
    %1325 = vmatprep.subr.mxu0 0.0
    %1326 = vmatpush1.msra.mxu0 0.0
    %1327 = vmatprep.subr.mxu0 0.0
    %1328 = vmatpush1.msra.mxu0 0.0
    %1329 = vmatprep.subr.mxu0 0.0
    %1330 = vmatpush1.msra.mxu0 0.0
    %1331 = vmatprep.subr.mxu0 0.0
    %1332 = vmatpush1.msra.mxu0 0.0
    %1333 = vmatprep.subr.mxu0 0.0
    %1334 = vmatpush1.msra.mxu0 %v1308
    %1335 = vmatprep.subr.mxu0 0.0
    %1336 = vmatpush1.msra.mxu0 %v1307
    %1337 = vmatprep.subr.mxu0 0.0
    %1338 = vmatpush1.msra.mxu0 %v1306
    %1339 = vmatprep.subr.mxu0 0.0
    %1340 = vmatpush1.msra.mxu0 %v1305
    %1341 = vmatprep.subr.mxu0 0.0
    %1342 = vmatpush2.msra.mxu0 0.0
    %1343 = vmatprep.subr.mxu0 0.0
    %1344 = vmatpush2.msra.mxu0 0.0
    %1345 = vmatprep.subr.mxu0 0.0
    %1346 = vmatpush2.msra.mxu0 0.0
    %1347 = vmatprep.subr.mxu0 0.0
    %1348 = vmatpush2.msra.mxu0 0.0
    %1349 = vmatprep.subr.mxu0 0.0
    %1350 = vmatpush2.msra.mxu0 0.0
    %1351 = vmatprep.subr.mxu0 0.0
    %1352 = vmatpush2.msra.mxu0 0.0
    %1353 = vmatprep.subr.mxu0 0.0
    %1354 = vmatpush2.msra.mxu0 0.0
    %1355 = vmatprep.subr.mxu0 0.0
    %1356 = vmatpush2.msra.mxu0 0.0
    %1357 = vmatprep.subr.mxu0 0.0
    %1358 = vmatpush2.msra.mxu0 0.0
    %1359 = vmatprep.subr.mxu0 0.0
    %1360 = vmatpush2.msra.mxu0 0.0
    %1361 = vmatprep.subr.mxu0 0.0
    %1362 = vmatpush2.msra.mxu0 0.0
    %1363 = vmatprep.subr.mxu0 0.0
    %1364 = vmatpush2.msra.mxu0 0.0
    %1365 = vmatprep.subr.mxu0 0.0
    %1366 = vmatpush2.msra.mxu0 0.0
    %1367 = vmatprep.subr.mxu0 0.0
    %1368 = vmatpush2.msra.mxu0 0.0
    %1369 = vmatprep.subr.mxu0 0.0
    %1370 = vmatpush2.msra.mxu0 0.0
    %1371 = vmatprep.subr.mxu0 0.0
    %1372 = vmatpush2.msra.mxu0 0.0
    %1373 = vmatprep.mubr.f32.mxu0 0.0
    %1374 = vmatmul.mubr.f32.gmra.mxu0 %v100
    %v1375 = vpop.f32.mrf.mxu0
    %v1376 = vadd.f32 0.0, %v1375
    %v1377 = vpop.f32.mrf.mxu0
    %1378 = vmatprep.mubr.f32.mxu0 0.0
    %1379 = vmatmul.mubr.f32.gmra.mxu0 %v103
    %v1380 = vpop.f32.mrf.mxu0
    %v1381 = vadd.f32 0.0, %v1380
    %v1382 = vpop.f32.mrf.mxu0
    %1383 = vdwg.mxu0
    %v1385 = vsel %vm330, %v1302, 0
    %1387 = vmatprep.subr.mxu0 0.0
    %1388 = vmatpush1.msra.mxu0 0.0
    %1389 = vmatprep.subr.mxu0 0.0
    %1390 = vmatpush1.msra.mxu0 0.0
    %1391 = vmatprep.subr.mxu0 0.0
    %1392 = vmatpush1.msra.mxu0 0.0
    %1393 = vmatprep.subr.mxu0 0.0
    %1394 = vmatpush1.msra.mxu0 0.0
    %1395 = vmatprep.subr.mxu0 0.0
    %1396 = vmatpush1.msra.mxu0 0.0
    %1397 = vmatprep.subr.mxu0 0.0
    %1398 = vmatpush1.msra.mxu0 0.0
    %1399 = vmatprep.subr.mxu0 0.0
    %1400 = vmatpush1.msra.mxu0 0.0
    %1401 = vmatprep.subr.mxu0 0.0
    %1402 = vmatpush1.msra.mxu0 0.0
    %1403 = vmatprep.subr.mxu0 0.0
    %1404 = vmatpush1.msra.mxu0 0.0
    %1405 = vmatprep.subr.mxu0 0.0
    %1406 = vmatpush1.msra.mxu0 0.0
    %1407 = vmatprep.subr.mxu0 0.0
    %1408 = vmatpush1.msra.mxu0 0.0
    %1409 = vmatprep.subr.mxu0 0.0
    %1410 = vmatpush1.msra.mxu0 0.0
    %1411 = vmatprep.subr.mxu0 0.0
    %1412 = vmatpush1.msra.mxu0 0.0
    %1413 = vmatprep.subr.mxu0 0.0
    %1414 = vmatpush1.msra.mxu0 0.0
    %1415 = vmatprep.subr.mxu0 0.0
    %1416 = vmatpush1.msra.mxu0 0.0
    %1417 = vmatprep.subr.mxu0 0.0
    %1418 = vmatpush1.msra.mxu0 %v1376
    %1419 = vmatprep.subr.mxu0 0.0
    %1420 = vmatpush2.msra.mxu0 0.0
    %1421 = vmatprep.subr.mxu0 0.0
    %1422 = vmatpush2.msra.mxu0 0.0
    %1423 = vmatprep.subr.mxu0 0.0
    %1424 = vmatpush2.msra.mxu0 0.0
    %1425 = vmatprep.subr.mxu0 0.0
    %1426 = vmatpush2.msra.mxu0 0.0
    %1427 = vmatprep.subr.mxu0 0.0
    %1428 = vmatpush2.msra.mxu0 0.0
    %1429 = vmatprep.subr.mxu0 0.0
    %1430 = vmatpush2.msra.mxu0 0.0
    %1431 = vmatprep.subr.mxu0 0.0
    %1432 = vmatpush2.msra.mxu0 0.0
    %1433 = vmatprep.subr.mxu0 0.0
    %1434 = vmatpush2.msra.mxu0 0.0
    %1435 = vmatprep.subr.mxu0 0.0
    %1436 = vmatpush2.msra.mxu0 0.0
    %1437 = vmatprep.subr.mxu0 0.0
    %1438 = vmatpush2.msra.mxu0 0.0
    %1439 = vmatprep.subr.mxu0 0.0
    %1440 = vmatpush2.msra.mxu0 0.0
    %1441 = vmatprep.subr.mxu0 0.0
    %1442 = vmatpush2.msra.mxu0 0.0
    %1443 = vmatprep.subr.mxu0 0.0
    %1444 = vmatpush2.msra.mxu0 0.0
    %1445 = vmatprep.subr.mxu0 0.0
    %1446 = vmatpush2.msra.mxu0 0.0
    %1447 = vmatprep.subr.mxu0 0.0
    %1448 = vmatpush2.msra.mxu0 0.0
    %1449 = vmatprep.subr.mxu0 0.0
    %1450 = vmatpush2.msra.mxu0 0.0
    %1451 = vmatprep.mubr.f32.mxu0 0.0
    %1452 = vmatmul.mubr.f32.gmra.mxu0 %v1385
    %v1453 = vpop.f32.mrf.mxu0
    %v1454 = vadd.f32 0.0, %v1453
    %v1455 = vpop.f32.mrf.mxu0
    %1456 = vdwg.mxu0
    %v1458 = vsel %vm330, %v1303, 0
    %1460 = vmatprep.subr.mxu0 0.0
    %1461 = vmatpush1.msra.mxu0 0.0
    %1462 = vmatprep.subr.mxu0 0.0
    %1463 = vmatpush1.msra.mxu0 0.0
    %1464 = vmatprep.subr.mxu0 0.0
    %1465 = vmatpush1.msra.mxu0 0.0
    %1466 = vmatprep.subr.mxu0 0.0
    %1467 = vmatpush1.msra.mxu0 0.0
    %1468 = vmatprep.subr.mxu0 0.0
    %1469 = vmatpush1.msra.mxu0 0.0
    %1470 = vmatprep.subr.mxu0 0.0
    %1471 = vmatpush1.msra.mxu0 0.0
    %1472 = vmatprep.subr.mxu0 0.0
    %1473 = vmatpush1.msra.mxu0 0.0
    %1474 = vmatprep.subr.mxu0 0.0
    %1475 = vmatpush1.msra.mxu0 0.0
    %1476 = vmatprep.subr.mxu0 0.0
    %1477 = vmatpush1.msra.mxu0 0.0
    %1478 = vmatprep.subr.mxu0 0.0
    %1479 = vmatpush1.msra.mxu0 0.0
    %1480 = vmatprep.subr.mxu0 0.0
    %1481 = vmatpush1.msra.mxu0 0.0
    %1482 = vmatprep.subr.mxu0 0.0
    %1483 = vmatpush1.msra.mxu0 0.0
    %1484 = vmatprep.subr.mxu0 0.0
    %1485 = vmatpush1.msra.mxu0 0.0
    %1486 = vmatprep.subr.mxu0 0.0
    %1487 = vmatpush1.msra.mxu0 0.0
    %1488 = vmatprep.subr.mxu0 0.0
    %1489 = vmatpush1.msra.mxu0 0.0
    %1490 = vmatprep.subr.mxu0 0.0
    %1491 = vmatpush1.msra.mxu0 %v1381
    %1492 = vmatprep.subr.mxu0 0.0
    %1493 = vmatpush2.msra.mxu0 0.0
    %1494 = vmatprep.subr.mxu0 0.0
    %1495 = vmatpush2.msra.mxu0 0.0
    %1496 = vmatprep.subr.mxu0 0.0
    %1497 = vmatpush2.msra.mxu0 0.0
    %1498 = vmatprep.subr.mxu0 0.0
    %1499 = vmatpush2.msra.mxu0 0.0
    %1500 = vmatprep.subr.mxu0 0.0
    %1501 = vmatpush2.msra.mxu0 0.0
    %1502 = vmatprep.subr.mxu0 0.0
    %1503 = vmatpush2.msra.mxu0 0.0
    %1504 = vmatprep.subr.mxu0 0.0
    %1505 = vmatpush2.msra.mxu0 0.0
    %1506 = vmatprep.subr.mxu0 0.0
    %1507 = vmatpush2.msra.mxu0 0.0
    %1508 = vmatprep.subr.mxu0 0.0
    %1509 = vmatpush2.msra.mxu0 0.0
    %1510 = vmatprep.subr.mxu0 0.0
    %1511 = vmatpush2.msra.mxu0 0.0
    %1512 = vmatprep.subr.mxu0 0.0
    %1513 = vmatpush2.msra.mxu0 0.0
    %1514 = vmatprep.subr.mxu0 0.0
    %1515 = vmatpush2.msra.mxu0 0.0
    %1516 = vmatprep.subr.mxu0 0.0
    %1517 = vmatpush2.msra.mxu0 0.0
    %1518 = vmatprep.subr.mxu0 0.0
    %1519 = vmatpush2.msra.mxu0 0.0
    %1520 = vmatprep.subr.mxu0 0.0
    %1521 = vmatpush2.msra.mxu0 0.0
    %1522 = vmatprep.subr.mxu0 0.0
    %1523 = vmatpush2.msra.mxu0 0.0
    %1524 = vmatprep.mubr.f32.mxu0 0.0
    %1525 = vmatmul.mubr.f32.gmra.mxu0 %v1458
    %v1526 = vpop.f32.mrf.mxu0
    %v1527 = vadd.f32 0.0, %v1526
    %v1528 = vpop.f32.mrf.mxu0
    %1529 = vdwg.mxu0
    %v1530 = vadd.f32 %v978, %v1454
    %v1531 = vadd.f32 %v1051, %v1527
    %s1532 = scalar_lea.vmem %s3, 96
    %v1533 = vld [vmem:[%s1532] sm:$0xff]
    %v1534 = vld [vmem:[%s1532 + $0x8] sm:$0xff]
    %v1535 = vld [vmem:[%s1532 + $0x10] sm:$0xff]
    %v1536 = vld [vmem:[%s1532 + $0x18] sm:$0xff]
    %1537 = vmatprep.subr.mxu0 0.0
    %1538 = vmatpush1.msra.mxu0 0.0
    %1539 = vmatprep.subr.mxu0 0.0
    %1540 = vmatpush1.msra.mxu0 0.0
    %1541 = vmatprep.subr.mxu0 0.0
    %1542 = vmatpush1.msra.mxu0 0.0
    %1543 = vmatprep.subr.mxu0 0.0
    %1544 = vmatpush1.msra.mxu0 0.0
    %1545 = vmatprep.subr.mxu0 0.0
    %1546 = vmatpush1.msra.mxu0 0.0
    %1547 = vmatprep.subr.mxu0 0.0
    %1548 = vmatpush1.msra.mxu0 0.0
    %1549 = vmatprep.subr.mxu0 0.0
    %1550 = vmatpush1.msra.mxu0 0.0
    %1551 = vmatprep.subr.mxu0 0.0
    %1552 = vmatpush1.msra.mxu0 0.0
    %1553 = vmatprep.subr.mxu0 0.0
    %1554 = vmatpush1.msra.mxu0 0.0
    %1555 = vmatprep.subr.mxu0 0.0
    %1556 = vmatpush1.msra.mxu0 0.0
    %1557 = vmatprep.subr.mxu0 0.0
    %1558 = vmatpush1.msra.mxu0 0.0
    %1559 = vmatprep.subr.mxu0 0.0
    %1560 = vmatpush1.msra.mxu0 0.0
    %1561 = vmatprep.subr.mxu0 0.0
    %1562 = vmatpush1.msra.mxu0 %v1536
    %1563 = vmatprep.subr.mxu0 0.0
    %1564 = vmatpush1.msra.mxu0 %v1535
    %1565 = vmatprep.subr.mxu0 0.0
    %1566 = vmatpush1.msra.mxu0 %v1534
    %1567 = vmatprep.subr.mxu0 0.0
    %1568 = vmatpush1.msra.mxu0 %v1533
    %1569 = vmatprep.subr.mxu0 0.0
    %1570 = vmatpush2.msra.mxu0 0.0
    %1571 = vmatprep.subr.mxu0 0.0
    %1572 = vmatpush2.msra.mxu0 0.0
    %1573 = vmatprep.subr.mxu0 0.0
    %1574 = vmatpush2.msra.mxu0 0.0
    %1575 = vmatprep.subr.mxu0 0.0
    %1576 = vmatpush2.msra.mxu0 0.0
    %1577 = vmatprep.subr.mxu0 0.0
    %1578 = vmatpush2.msra.mxu0 0.0
    %1579 = vmatprep.subr.mxu0 0.0
    %1580 = vmatpush2.msra.mxu0 0.0
    %1581 = vmatprep.subr.mxu0 0.0
    %1582 = vmatpush2.msra.mxu0 0.0
    %1583 = vmatprep.subr.mxu0 0.0
    %1584 = vmatpush2.msra.mxu0 0.0
    %1585 = vmatprep.subr.mxu0 0.0
    %1586 = vmatpush2.msra.mxu0 0.0
    %1587 = vmatprep.subr.mxu0 0.0
    %1588 = vmatpush2.msra.mxu0 0.0
    %1589 = vmatprep.subr.mxu0 0.0
    %1590 = vmatpush2.msra.mxu0 0.0
    %1591 = vmatprep.subr.mxu0 0.0
    %1592 = vmatpush2.msra.mxu0 0.0
    %1593 = vmatprep.subr.mxu0 0.0
    %1594 = vmatpush2.msra.mxu0 0.0
    %1595 = vmatprep.subr.mxu0 0.0
    %1596 = vmatpush2.msra.mxu0 0.0
    %1597 = vmatprep.subr.mxu0 0.0
    %1598 = vmatpush2.msra.mxu0 0.0
    %1599 = vmatprep.subr.mxu0 0.0
    %1600 = vmatpush2.msra.mxu0 0.0
    %1601 = vmatprep.mubr.f32.mxu0 0.0
    %1602 = vmatmul.mubr.f32.gmra.mxu0 %v100
    %v1603 = vpop.f32.mrf.mxu0
    %v1604 = vadd.f32 0.0, %v1603
    %v1605 = vpop.f32.mrf.mxu0
    %1606 = vmatprep.mubr.f32.mxu0 0.0
    %1607 = vmatmul.mubr.f32.gmra.mxu0 %v103
    %v1608 = vpop.f32.mrf.mxu0
    %v1609 = vadd.f32 0.0, %v1608
    %v1610 = vpop.f32.mrf.mxu0
    %1611 = vdwg.mxu0
    %v1613 = vsel %vm46, %v1604, 0
    %1615 = vmatprep.subr.mxu0 0.0
    %1616 = vmatpush1.xpose.msra.mxu0 0.0
    %1617 = vmatprep.subr.mxu0 0.0
    %1618 = vmatpush1.xpose.msra.mxu0 0.0
    %1619 = vmatprep.subr.mxu0 0.0
    %1620 = vmatpush1.xpose.msra.mxu0 0.0
    %1621 = vmatprep.subr.mxu0 0.0
    %1622 = vmatpush1.xpose.msra.mxu0 0.0
    %1623 = vmatprep.subr.mxu0 0.0
    %1624 = vmatpush1.xpose.msra.mxu0 0.0
    %1625 = vmatprep.subr.mxu0 0.0
    %1626 = vmatpush1.xpose.msra.mxu0 0.0
    %1627 = vmatprep.subr.mxu0 0.0
    %1628 = vmatpush1.xpose.msra.mxu0 0.0
    %1629 = vmatprep.subr.mxu0 0.0
    %1630 = vmatpush1.xpose.msra.mxu0 0.0
    %1631 = vmatprep.subr.mxu0 0.0
    %1632 = vmatpush1.xpose.msra.mxu0 0.0
    %1633 = vmatprep.subr.mxu0 0.0
    %1634 = vmatpush1.xpose.msra.mxu0 0.0
    %1635 = vmatprep.subr.mxu0 0.0
    %1636 = vmatpush1.xpose.msra.mxu0 0.0
    %1637 = vmatprep.subr.mxu0 0.0
    %1638 = vmatpush1.xpose.msra.mxu0 0.0
    %1639 = vmatprep.subr.mxu0 0.0
    %1640 = vmatpush1.xpose.msra.mxu0 0.0
    %1641 = vmatprep.subr.mxu0 0.0
    %1642 = vmatpush1.xpose.msra.mxu0 0.0
    %1643 = vmatprep.subr.mxu0 0.0
    %1644 = vmatpush1.xpose.msra.mxu0 0.0
    %1645 = vmatprep.subr.mxu0 0.0
    %1646 = vmatpush1.xpose.msra.mxu0 %v100
    %1647 = vmatprep.subr.mxu0 0.0
    %1648 = vmatpush2.xpose.msra.mxu0 0.0
    %1649 = vmatprep.subr.mxu0 0.0
    %1650 = vmatpush2.xpose.msra.mxu0 0.0
    %1651 = vmatprep.subr.mxu0 0.0
    %1652 = vmatpush2.xpose.msra.mxu0 0.0
    %1653 = vmatprep.subr.mxu0 0.0
    %1654 = vmatpush2.xpose.msra.mxu0 0.0
    %1655 = vmatprep.subr.mxu0 0.0
    %1656 = vmatpush2.xpose.msra.mxu0 0.0
    %1657 = vmatprep.subr.mxu0 0.0
    %1658 = vmatpush2.xpose.msra.mxu0 0.0
    %1659 = vmatprep.subr.mxu0 0.0
    %1660 = vmatpush2.xpose.msra.mxu0 0.0
    %1661 = vmatprep.subr.mxu0 0.0
    %1662 = vmatpush2.xpose.msra.mxu0 0.0
    %1663 = vmatprep.subr.mxu0 0.0
    %1664 = vmatpush2.xpose.msra.mxu0 0.0
    %1665 = vmatprep.subr.mxu0 0.0
    %1666 = vmatpush2.xpose.msra.mxu0 0.0
    %1667 = vmatprep.subr.mxu0 0.0
    %1668 = vmatpush2.xpose.msra.mxu0 0.0
    %1669 = vmatprep.subr.mxu0 0.0
    %1670 = vmatpush2.xpose.msra.mxu0 0.0
    %1671 = vmatprep.subr.mxu0 0.0
    %1672 = vmatpush2.xpose.msra.mxu0 0.0
    %1673 = vmatprep.subr.mxu0 0.0
    %1674 = vmatpush2.xpose.msra.mxu0 0.0
    %1675 = vmatprep.subr.mxu0 0.0
    %1676 = vmatpush2.xpose.msra.mxu0 0.0
    %1677 = vmatprep.subr.mxu0 0.0
    %1678 = vmatpush2.xpose.msra.mxu0 0.0
    %1679 = vmatprep.mubr.f32.mxu0 0.0
    %1680 = vmatmul.mubr.f32.gmra.mxu0 %v1613
    %v1681 = vpop.f32.mrf.mxu0
    %v1682 = vadd.f32 0.0, %v1681
    %v1683 = vpop.f32.mrf.mxu0
    %1684 = vdwg.mxu0
    %v1686 = vsel %vm46, %v1609, 0
    %1688 = vmatprep.subr.mxu0 0.0
    %1689 = vmatpush1.xpose.msra.mxu0 0.0
    %1690 = vmatprep.subr.mxu0 0.0
    %1691 = vmatpush1.xpose.msra.mxu0 0.0
    %1692 = vmatprep.subr.mxu0 0.0
    %1693 = vmatpush1.xpose.msra.mxu0 0.0
    %1694 = vmatprep.subr.mxu0 0.0
    %1695 = vmatpush1.xpose.msra.mxu0 0.0
    %1696 = vmatprep.subr.mxu0 0.0
    %1697 = vmatpush1.xpose.msra.mxu0 0.0
    %1698 = vmatprep.subr.mxu0 0.0
    %1699 = vmatpush1.xpose.msra.mxu0 0.0
    %1700 = vmatprep.subr.mxu0 0.0
    %1701 = vmatpush1.xpose.msra.mxu0 0.0
    %1702 = vmatprep.subr.mxu0 0.0
    %1703 = vmatpush1.xpose.msra.mxu0 0.0
    %1704 = vmatprep.subr.mxu0 0.0
    %1705 = vmatpush1.xpose.msra.mxu0 0.0
    %1706 = vmatprep.subr.mxu0 0.0
    %1707 = vmatpush1.xpose.msra.mxu0 0.0
    %1708 = vmatprep.subr.mxu0 0.0
    %1709 = vmatpush1.xpose.msra.mxu0 0.0
    %1710 = vmatprep.subr.mxu0 0.0
    %1711 = vmatpush1.xpose.msra.mxu0 0.0
    %1712 = vmatprep.subr.mxu0 0.0
    %1713 = vmatpush1.xpose.msra.mxu0 0.0
    %1714 = vmatprep.subr.mxu0 0.0
    %1715 = vmatpush1.xpose.msra.mxu0 0.0
    %1716 = vmatprep.subr.mxu0 0.0
    %1717 = vmatpush1.xpose.msra.mxu0 0.0
    %1718 = vmatprep.subr.mxu0 0.0
    %1719 = vmatpush1.xpose.msra.mxu0 %v103
    %1720 = vmatprep.subr.mxu0 0.0
    %1721 = vmatpush2.xpose.msra.mxu0 0.0
    %1722 = vmatprep.subr.mxu0 0.0
    %1723 = vmatpush2.xpose.msra.mxu0 0.0
    %1724 = vmatprep.subr.mxu0 0.0
    %1725 = vmatpush2.xpose.msra.mxu0 0.0
    %1726 = vmatprep.subr.mxu0 0.0
    %1727 = vmatpush2.xpose.msra.mxu0 0.0
    %1728 = vmatprep.subr.mxu0 0.0
    %1729 = vmatpush2.xpose.msra.mxu0 0.0
    %1730 = vmatprep.subr.mxu0 0.0
    %1731 = vmatpush2.xpose.msra.mxu0 0.0
    %1732 = vmatprep.subr.mxu0 0.0
    %1733 = vmatpush2.xpose.msra.mxu0 0.0
    %1734 = vmatprep.subr.mxu0 0.0
    %1735 = vmatpush2.xpose.msra.mxu0 0.0
    %1736 = vmatprep.subr.mxu0 0.0
    %1737 = vmatpush2.xpose.msra.mxu0 0.0
    %1738 = vmatprep.subr.mxu0 0.0
    %1739 = vmatpush2.xpose.msra.mxu0 0.0
    %1740 = vmatprep.subr.mxu0 0.0
    %1741 = vmatpush2.xpose.msra.mxu0 0.0
    %1742 = vmatprep.subr.mxu0 0.0
    %1743 = vmatpush2.xpose.msra.mxu0 0.0
    %1744 = vmatprep.subr.mxu0 0.0
    %1745 = vmatpush2.xpose.msra.mxu0 0.0
    %1746 = vmatprep.subr.mxu0 0.0
    %1747 = vmatpush2.xpose.msra.mxu0 0.0
    %1748 = vmatprep.subr.mxu0 0.0
    %1749 = vmatpush2.xpose.msra.mxu0 0.0
    %1750 = vmatprep.subr.mxu0 0.0
    %1751 = vmatpush2.xpose.msra.mxu0 0.0
    %1752 = vmatprep.mubr.f32.mxu0 0.0
    %1753 = vmatmul.mubr.f32.gmra.mxu0 %v1686
    %v1754 = vpop.f32.mrf.mxu0
    %v1755 = vadd.f32 0.0, %v1754
    %v1756 = vpop.f32.mrf.mxu0
    %1757 = vdwg.mxu0
    %v1758 = vsel %vm327, %v1682, -1e+30
    %v1759 = vsel %vm327, %v1755, -1e+30
    %v1760 = vsel %vm330, %v1758, -inf
    %1761 = vmax.xlane.f32.xlu0 %v1760
    %v1762 = vpop.xlane.xlu0 %1761
    %v1763 = vsel %vm330, %v1759, -inf
    %1764 = vmax.xlane.f32.xlu0 %v1763
    %v1765 = vpop.xlane.xlu0 %1764
    %v1766 = vsub.f32 %v1758, %v1762
    %v1767 = vsub.f32 %v1759, %v1765
    %v1768 = vmul.f32 %v1766, 1.442695
    %v1769 = vpow.pop %v1768
    %v1770 = vmul.f32 %v1767, 1.442695
    %v1771 = vpow.pop %v1770
    %v1772 = vsel %vm330, %v1769, 0.0
    %1773 = vadd.xlane.f32.xlu0 %v1772
    %v1774 = vpop.xlane.xlu0 %1773
    %v1775 = vsel %vm330, %v1771, 0.0
    %1776 = vadd.xlane.f32.xlu0 %v1775
    %v1777 = vpop.xlane.xlu0 %1776
    %v1778 = vrcp.pop %v1774
    %v1779 = vrcp.pop %v1777
    %v1780 = vmul.f32 %v1769, %v1778
    %v1781 = vmul.f32 %v1771, %v1779
    %s1782 = scalar_lea.vmem %s4, 96
    %v1783 = vld [vmem:[%s1782] sm:$0xff]
    %v1784 = vld [vmem:[%s1782 + $0x8] sm:$0xff]
    %v1785 = vld [vmem:[%s1782 + $0x10] sm:$0xff]
    %v1786 = vld [vmem:[%s1782 + $0x18] sm:$0xff]
    %1787 = vmatprep.subr.mxu0 0.0
    %1788 = vmatpush1.msra.mxu0 0.0
    %1789 = vmatprep.subr.mxu0 0.0
    %1790 = vmatpush1.msra.mxu0 0.0
    %1791 = vmatprep.subr.mxu0 0.0
    %1792 = vmatpush1.msra.mxu0 0.0
    %1793 = vmatprep.subr.mxu0 0.0
    %1794 = vmatpush1.msra.mxu0 0.0
    %1795 = vmatprep.subr.mxu0 0.0
    %1796 = vmatpush1.msra.mxu0 0.0
    %1797 = vmatprep.subr.mxu0 0.0
    %1798 = vmatpush1.msra.mxu0 0.0
    %1799 = vmatprep.subr.mxu0 0.0
    %1800 = vmatpush1.msra.mxu0 0.0
    %1801 = vmatprep.subr.mxu0 0.0
    %1802 = vmatpush1.msra.mxu0 0.0
    %1803 = vmatprep.subr.mxu0 0.0
    %1804 = vmatpush1.msra.mxu0 0.0
    %1805 = vmatprep.subr.mxu0 0.0
    %1806 = vmatpush1.msra.mxu0 0.0
    %1807 = vmatprep.subr.mxu0 0.0
    %1808 = vmatpush1.msra.mxu0 0.0
    %1809 = vmatprep.subr.mxu0 0.0
    %1810 = vmatpush1.msra.mxu0 0.0
    %1811 = vmatprep.subr.mxu0 0.0
    %1812 = vmatpush1.msra.mxu0 %v1786
    %1813 = vmatprep.subr.mxu0 0.0
    %1814 = vmatpush1.msra.mxu0 %v1785
    %1815 = vmatprep.subr.mxu0 0.0
    %1816 = vmatpush1.msra.mxu0 %v1784
    %1817 = vmatprep.subr.mxu0 0.0
    %1818 = vmatpush1.msra.mxu0 %v1783
    %1819 = vmatprep.subr.mxu0 0.0
    %1820 = vmatpush2.msra.mxu0 0.0
    %1821 = vmatprep.subr.mxu0 0.0
    %1822 = vmatpush2.msra.mxu0 0.0
    %1823 = vmatprep.subr.mxu0 0.0
    %1824 = vmatpush2.msra.mxu0 0.0
    %1825 = vmatprep.subr.mxu0 0.0
    %1826 = vmatpush2.msra.mxu0 0.0
    %1827 = vmatprep.subr.mxu0 0.0
    %1828 = vmatpush2.msra.mxu0 0.0
    %1829 = vmatprep.subr.mxu0 0.0
    %1830 = vmatpush2.msra.mxu0 0.0
    %1831 = vmatprep.subr.mxu0 0.0
    %1832 = vmatpush2.msra.mxu0 0.0
    %1833 = vmatprep.subr.mxu0 0.0
    %1834 = vmatpush2.msra.mxu0 0.0
    %1835 = vmatprep.subr.mxu0 0.0
    %1836 = vmatpush2.msra.mxu0 0.0
    %1837 = vmatprep.subr.mxu0 0.0
    %1838 = vmatpush2.msra.mxu0 0.0
    %1839 = vmatprep.subr.mxu0 0.0
    %1840 = vmatpush2.msra.mxu0 0.0
    %1841 = vmatprep.subr.mxu0 0.0
    %1842 = vmatpush2.msra.mxu0 0.0
    %1843 = vmatprep.subr.mxu0 0.0
    %1844 = vmatpush2.msra.mxu0 0.0
    %1845 = vmatprep.subr.mxu0 0.0
    %1846 = vmatpush2.msra.mxu0 0.0
    %1847 = vmatprep.subr.mxu0 0.0
    %1848 = vmatpush2.msra.mxu0 0.0
    %1849 = vmatprep.subr.mxu0 0.0
    %1850 = vmatpush2.msra.mxu0 0.0
    %1851 = vmatprep.mubr.f32.mxu0 0.0
    %1852 = vmatmul.mubr.f32.gmra.mxu0 %v100
    %v1853 = vpop.f32.mrf.mxu0
    %v1854 = vadd.f32 0.0, %v1853
    %v1855 = vpop.f32.mrf.mxu0
    %1856 = vmatprep.mubr.f32.mxu0 0.0
    %1857 = vmatmul.mubr.f32.gmra.mxu0 %v103
    %v1858 = vpop.f32.mrf.mxu0
    %v1859 = vadd.f32 0.0, %v1858
    %v1860 = vpop.f32.mrf.mxu0
    %1861 = vdwg.mxu0
    %v1863 = vsel %vm330, %v1780, 0
    %1865 = vmatprep.subr.mxu0 0.0
    %1866 = vmatpush1.msra.mxu0 0.0
    %1867 = vmatprep.subr.mxu0 0.0
    %1868 = vmatpush1.msra.mxu0 0.0
    %1869 = vmatprep.subr.mxu0 0.0
    %1870 = vmatpush1.msra.mxu0 0.0
    %1871 = vmatprep.subr.mxu0 0.0
    %1872 = vmatpush1.msra.mxu0 0.0
    %1873 = vmatprep.subr.mxu0 0.0
    %1874 = vmatpush1.msra.mxu0 0.0
    %1875 = vmatprep.subr.mxu0 0.0
    %1876 = vmatpush1.msra.mxu0 0.0
    %1877 = vmatprep.subr.mxu0 0.0
    %1878 = vmatpush1.msra.mxu0 0.0
    %1879 = vmatprep.subr.mxu0 0.0
    %1880 = vmatpush1.msra.mxu0 0.0
    %1881 = vmatprep.subr.mxu0 0.0
    %1882 = vmatpush1.msra.mxu0 0.0
    %1883 = vmatprep.subr.mxu0 0.0
    %1884 = vmatpush1.msra.mxu0 0.0
    %1885 = vmatprep.subr.mxu0 0.0
    %1886 = vmatpush1.msra.mxu0 0.0
    %1887 = vmatprep.subr.mxu0 0.0
    %1888 = vmatpush1.msra.mxu0 0.0
    %1889 = vmatprep.subr.mxu0 0.0
    %1890 = vmatpush1.msra.mxu0 0.0
    %1891 = vmatprep.subr.mxu0 0.0
    %1892 = vmatpush1.msra.mxu0 0.0
    %1893 = vmatprep.subr.mxu0 0.0
    %1894 = vmatpush1.msra.mxu0 0.0
    %1895 = vmatprep.subr.mxu0 0.0
    %1896 = vmatpush1.msra.mxu0 %v1854
    %1897 = vmatprep.subr.mxu0 0.0
    %1898 = vmatpush2.msra.mxu0 0.0
    %1899 = vmatprep.subr.mxu0 0.0
    %1900 = vmatpush2.msra.mxu0 0.0
    %1901 = vmatprep.subr.mxu0 0.0
    %1902 = vmatpush2.msra.mxu0 0.0
    %1903 = vmatprep.subr.mxu0 0.0
    %1904 = vmatpush2.msra.mxu0 0.0
    %1905 = vmatprep.subr.mxu0 0.0
    %1906 = vmatpush2.msra.mxu0 0.0
    %1907 = vmatprep.subr.mxu0 0.0
    %1908 = vmatpush2.msra.mxu0 0.0
    %1909 = vmatprep.subr.mxu0 0.0
    %1910 = vmatpush2.msra.mxu0 0.0
    %1911 = vmatprep.subr.mxu0 0.0
    %1912 = vmatpush2.msra.mxu0 0.0
    %1913 = vmatprep.subr.mxu0 0.0
    %1914 = vmatpush2.msra.mxu0 0.0
    %1915 = vmatprep.subr.mxu0 0.0
    %1916 = vmatpush2.msra.mxu0 0.0
    %1917 = vmatprep.subr.mxu0 0.0
    %1918 = vmatpush2.msra.mxu0 0.0
    %1919 = vmatprep.subr.mxu0 0.0
    %1920 = vmatpush2.msra.mxu0 0.0
    %1921 = vmatprep.subr.mxu0 0.0
    %1922 = vmatpush2.msra.mxu0 0.0
    %1923 = vmatprep.subr.mxu0 0.0
    %1924 = vmatpush2.msra.mxu0 0.0
    %1925 = vmatprep.subr.mxu0 0.0
    %1926 = vmatpush2.msra.mxu0 0.0
    %1927 = vmatprep.subr.mxu0 0.0
    %1928 = vmatpush2.msra.mxu0 0.0
    %1929 = vmatprep.mubr.f32.mxu0 0.0
    %1930 = vmatmul.mubr.f32.gmra.mxu0 %v1863
    %v1931 = vpop.f32.mrf.mxu0
    %v1932 = vadd.f32 0.0, %v1931
    %v1933 = vpop.f32.mrf.mxu0
    %1934 = vdwg.mxu0
    %v1936 = vsel %vm330, %v1781, 0
    %1938 = vmatprep.subr.mxu0 0.0
    %1939 = vmatpush1.msra.mxu0 0.0
    %1940 = vmatprep.subr.mxu0 0.0
    %1941 = vmatpush1.msra.mxu0 0.0
    %1942 = vmatprep.subr.mxu0 0.0
    %1943 = vmatpush1.msra.mxu0 0.0
    %1944 = vmatprep.subr.mxu0 0.0
    %1945 = vmatpush1.msra.mxu0 0.0
    %1946 = vmatprep.subr.mxu0 0.0
    %1947 = vmatpush1.msra.mxu0 0.0
    %1948 = vmatprep.subr.mxu0 0.0
    %1949 = vmatpush1.msra.mxu0 0.0
    %1950 = vmatprep.subr.mxu0 0.0
    %1951 = vmatpush1.msra.mxu0 0.0
    %1952 = vmatprep.subr.mxu0 0.0
    %1953 = vmatpush1.msra.mxu0 0.0
    %1954 = vmatprep.subr.mxu0 0.0
    %1955 = vmatpush1.msra.mxu0 0.0
    %1956 = vmatprep.subr.mxu0 0.0
    %1957 = vmatpush1.msra.mxu0 0.0
    %1958 = vmatprep.subr.mxu0 0.0
    %1959 = vmatpush1.msra.mxu0 0.0
    %1960 = vmatprep.subr.mxu0 0.0
    %1961 = vmatpush1.msra.mxu0 0.0
    %1962 = vmatprep.subr.mxu0 0.0
    %1963 = vmatpush1.msra.mxu0 0.0
    %1964 = vmatprep.subr.mxu0 0.0
    %1965 = vmatpush1.msra.mxu0 0.0
    %1966 = vmatprep.subr.mxu0 0.0
    %1967 = vmatpush1.msra.mxu0 0.0
    %1968 = vmatprep.subr.mxu0 0.0
    %1969 = vmatpush1.msra.mxu0 %v1859
    %1970 = vmatprep.subr.mxu0 0.0
    %1971 = vmatpush2.msra.mxu0 0.0
    %1972 = vmatprep.subr.mxu0 0.0
    %1973 = vmatpush2.msra.mxu0 0.0
    %1974 = vmatprep.subr.mxu0 0.0
    %1975 = vmatpush2.msra.mxu0 0.0
    %1976 = vmatprep.subr.mxu0 0.0
    %1977 = vmatpush2.msra.mxu0 0.0
    %1978 = vmatprep.subr.mxu0 0.0
    %1979 = vmatpush2.msra.mxu0 0.0
    %1980 = vmatprep.subr.mxu0 0.0
    %1981 = vmatpush2.msra.mxu0 0.0
    %1982 = vmatprep.subr.mxu0 0.0
    %1983 = vmatpush2.msra.mxu0 0.0
    %1984 = vmatprep.subr.mxu0 0.0
    %1985 = vmatpush2.msra.mxu0 0.0
    %1986 = vmatprep.subr.mxu0 0.0
    %1987 = vmatpush2.msra.mxu0 0.0
    %1988 = vmatprep.subr.mxu0 0.0
    %1989 = vmatpush2.msra.mxu0 0.0
    %1990 = vmatprep.subr.mxu0 0.0
    %1991 = vmatpush2.msra.mxu0 0.0
    %1992 = vmatprep.subr.mxu0 0.0
    %1993 = vmatpush2.msra.mxu0 0.0
    %1994 = vmatprep.subr.mxu0 0.0
    %1995 = vmatpush2.msra.mxu0 0.0
    %1996 = vmatprep.subr.mxu0 0.0
    %1997 = vmatpush2.msra.mxu0 0.0
    %1998 = vmatprep.subr.mxu0 0.0
    %1999 = vmatpush2.msra.mxu0 0.0
    %2000 = vmatprep.subr.mxu0 0.0
    %2001 = vmatpush2.msra.mxu0 0.0
    %2002 = vmatprep.mubr.f32.mxu0 0.0
    %2003 = vmatmul.mubr.f32.gmra.mxu0 %v1936
    %v2004 = vpop.f32.mrf.mxu0
    %v2005 = vadd.f32 0.0, %v2004
    %v2006 = vpop.f32.mrf.mxu0
    %2007 = vdwg.mxu0
    %v2008 = vadd.f32 %v1530, %v1932
    %v2009 = vadd.f32 %v1531, %v2005
    %v2010 = vadd.f32 %v42, %v2008
    %v2011 = vadd.f32 %v43, %v2009
    %v2012 = vld [vmem:[%s5] sm:$0x1]
    %v2014 = vlaneseq
    %v2015 = vshrl.u32 %v2014, 7
    %v2016 = vsub.s32 0, %v2015
    %v2017 = vrot.slane %v2012, %v2016
    %v2019 = vadd.f32 %v2010, %v2017
    %v2020 = vadd.f32 %v2011, %v2017
    %v2021 = vld [vmem:[%s6] sm:$0x1]
    %v2022 = vld [vmem:[%s7] sm:$0x1]
    %v2023 = vsel %vm46, %v2019, 0.0
    %2024 = vadd.xlane.f32.xlu0 %v2023
    %v2025 = vpop.xlane.xlu0 %2024
    %v2026 = vsel %vm46, %v2020, 0.0
    %2027 = vadd.xlane.f32.xlu0 %v2026
    %v2028 = vpop.xlane.xlu0 %2027
    %v2029 = vmul.f32 %v2025, %v53
    %v2030 = vmul.f32 %v2028, %v53
    %v2031 = vsub.f32 %v2019, %v2029
    %v2032 = vsub.f32 %v2020, %v2030
    %v2033 = vmul.f32 %v2031, %v2031
    %v2034 = vmul.f32 %v2032, %v2032
    %v2035 = vsel %vm46, %v2033, 0.0
    %2036 = vadd.xlane.f32.xlu0 %v2035
    %v2037 = vpop.xlane.xlu0 %2036
    %v2038 = vsel %vm46, %v2034, 0.0
    %2039 = vadd.xlane.f32.xlu0 %v2038
    %v2040 = vpop.xlane.xlu0 %2039
    %v2041 = vmul.f32 %v2037, %v53
    %v2042 = vmul.f32 %v2040, %v53
    %v2043 = vadd.f32 %v2041, 1e-05
    %v2044 = vadd.f32 %v2042, 1e-05
    %v2045 = vrsqrt.pop %v2043
    %v2046 = vrsqrt.pop %v2044
    %v2047 = vmul.f32 %v2031, %v2045
    %v2048 = vmul.f32 %v2032, %v2046
    %v2050 = vlaneseq
    %v2051 = vshrl.u32 %v2050, 7
    %v2052 = vsub.s32 0, %v2051
    %v2053 = vrot.slane %v2021, %v2052
    %v2055 = vmul.f32 %v2047, %v2053
    %v2056 = vmul.f32 %v2048, %v2053
    %v2058 = vlaneseq
    %v2059 = vshrl.u32 %v2058, 7
    %v2060 = vsub.s32 0, %v2059
    %v2061 = vrot.slane %v2022, %v2060
    %v2063 = vadd.f32 %v2055, %v2061
    %v2064 = vadd.f32 %v2056, %v2061
    %v2065 = vld [vmem:[%s8] sm:$0xff]
    %v2066 = vld [vmem:[%s8 + $0x8] sm:$0xff]
    %v2067 = vld [vmem:[%s8 + $0x10] sm:$0xff]
    %v2068 = vld [vmem:[%s8 + $0x18] sm:$0xff]
    %v2069 = vld [vmem:[%s9] sm:$0x1]
    %v2071 = vlaneseq
    %v2072 = vshrl.u32 %v2071, 7
    %v2073 = vsub.s32 0, %v2072
    %v2074 = vrot.slane %v2069, %v2073
    %v2077 = vsel %vm46, %v2063, 0
    %v2080 = vsel %vm46, %v2064, 0
    %2082 = vmatprep.subr.mxu0 0.0
    %2083 = vmatpush1.msra.mxu0 0.0
    %2084 = vmatprep.subr.mxu0 0.0
    %2085 = vmatpush1.msra.mxu0 0.0
    %2086 = vmatprep.subr.mxu0 0.0
    %2087 = vmatpush1.msra.mxu0 0.0
    %2088 = vmatprep.subr.mxu0 0.0
    %2089 = vmatpush1.msra.mxu0 0.0
    %2090 = vmatprep.subr.mxu0 0.0
    %2091 = vmatpush1.msra.mxu0 0.0
    %2092 = vmatprep.subr.mxu0 0.0
    %2093 = vmatpush1.msra.mxu0 0.0
    %2094 = vmatprep.subr.mxu0 0.0
    %2095 = vmatpush1.msra.mxu0 0.0
    %2096 = vmatprep.subr.mxu0 0.0
    %2097 = vmatpush1.msra.mxu0 0.0
    %2098 = vmatprep.subr.mxu0 0.0
    %2099 = vmatpush1.msra.mxu0 0.0
    %2100 = vmatprep.subr.mxu0 0.0
    %2101 = vmatpush1.msra.mxu0 0.0
    %2102 = vmatprep.subr.mxu0 0.0
    %2103 = vmatpush1.msra.mxu0 0.0
    %2104 = vmatprep.subr.mxu0 0.0
    %2105 = vmatpush1.msra.mxu0 0.0
    %2106 = vmatprep.subr.mxu0 0.0
    %2107 = vmatpush1.msra.mxu0 %v2068
    %2108 = vmatprep.subr.mxu0 0.0
    %2109 = vmatpush1.msra.mxu0 %v2067
    %2110 = vmatprep.subr.mxu0 0.0
    %2111 = vmatpush1.msra.mxu0 %v2066
    %2112 = vmatprep.subr.mxu0 0.0
    %2113 = vmatpush1.msra.mxu0 %v2065
    %2114 = vmatprep.subr.mxu0 0.0
    %2115 = vmatpush2.msra.mxu0 0.0
    %2116 = vmatprep.subr.mxu0 0.0
    %2117 = vmatpush2.msra.mxu0 0.0
    %2118 = vmatprep.subr.mxu0 0.0
    %2119 = vmatpush2.msra.mxu0 0.0
    %2120 = vmatprep.subr.mxu0 0.0
    %2121 = vmatpush2.msra.mxu0 0.0
    %2122 = vmatprep.subr.mxu0 0.0
    %2123 = vmatpush2.msra.mxu0 0.0
    %2124 = vmatprep.subr.mxu0 0.0
    %2125 = vmatpush2.msra.mxu0 0.0
    %2126 = vmatprep.subr.mxu0 0.0
    %2127 = vmatpush2.msra.mxu0 0.0
    %2128 = vmatprep.subr.mxu0 0.0
    %2129 = vmatpush2.msra.mxu0 0.0
    %2130 = vmatprep.subr.mxu0 0.0
    %2131 = vmatpush2.msra.mxu0 0.0
    %2132 = vmatprep.subr.mxu0 0.0
    %2133 = vmatpush2.msra.mxu0 0.0
    %2134 = vmatprep.subr.mxu0 0.0
    %2135 = vmatpush2.msra.mxu0 0.0
    %2136 = vmatprep.subr.mxu0 0.0
    %2137 = vmatpush2.msra.mxu0 0.0
    %2138 = vmatprep.subr.mxu0 0.0
    %2139 = vmatpush2.msra.mxu0 0.0
    %2140 = vmatprep.subr.mxu0 0.0
    %2141 = vmatpush2.msra.mxu0 0.0
    %2142 = vmatprep.subr.mxu0 0.0
    %2143 = vmatpush2.msra.mxu0 0.0
    %2144 = vmatprep.subr.mxu0 0.0
    %2145 = vmatpush2.msra.mxu0 0.0
    %2146 = vmatprep.mubr.f32.mxu0 0.0
    %2147 = vmatmul.mubr.f32.gmra.mxu0 %v2077
    %v2148 = vpop.f32.mrf.mxu0
    %v2149 = vadd.f32 %v2074, %v2148
    %v2150 = vpop.f32.mrf.mxu0
    %2151 = vmatprep.mubr.f32.mxu0 0.0
    %2152 = vmatmul.mubr.f32.gmra.mxu0 %v2080
    %v2153 = vpop.f32.mrf.mxu0
    %v2154 = vadd.f32 %v2074, %v2153
    %v2155 = vpop.f32.mrf.mxu0
    %2156 = vdwg.mxu0
    %v2157 = vmax.f32 %v2149, 0.0
    %v2158 = vmax.f32 %v2154, 0.0
    %v2159 = vld [vmem:[%s10] sm:$0xff]
    %v2160 = vld [vmem:[%s10 + $0x8] sm:$0xff]
    %v2161 = vld [vmem:[%s10 + $0x10] sm:$0xff]
    %v2162 = vld [vmem:[%s10 + $0x18] sm:$0xff]
    %v2163 = vld [vmem:[%s10 + $0x20] sm:$0xff]
    %v2164 = vld [vmem:[%s10 + $0x28] sm:$0xff]
    %v2165 = vld [vmem:[%s10 + $0x30] sm:$0xff]
    %v2166 = vld [vmem:[%s10 + $0x38] sm:$0xff]
    %v2167 = vld [vmem:[%s10 + $0x40] sm:$0xff]
    %v2168 = vld [vmem:[%s10 + $0x48] sm:$0xff]
    %v2169 = vld [vmem:[%s10 + $0x50] sm:$0xff]
    %v2170 = vld [vmem:[%s10 + $0x58] sm:$0xff]
    %v2171 = vld [vmem:[%s10 + $0x60] sm:$0xff]
    %v2172 = vld [vmem:[%s10 + $0x68] sm:$0xff]
    %v2173 = vld [vmem:[%s10 + $0x70] sm:$0xff]
    %v2174 = vld [vmem:[%s10 + $0x78] sm:$0xff]
    %v2175 = vld [vmem:[%s11] sm:$0x1]
    %v2177 = vlaneseq
    %v2178 = vshrl.u32 %v2177, 7
    %v2179 = vsub.s32 0, %v2178
    %v2180 = vrot.slane %v2175, %v2179
    %2182 = vmatprep.subr.mxu0 0.0
    %2183 = vmatpush1.msra.mxu0 %v2174
    %2184 = vmatprep.subr.mxu0 0.0
    %2185 = vmatpush1.msra.mxu0 %v2173
    %2186 = vmatprep.subr.mxu0 0.0
    %2187 = vmatpush1.msra.mxu0 %v2172
    %2188 = vmatprep.subr.mxu0 0.0
    %2189 = vmatpush1.msra.mxu0 %v2171
    %2190 = vmatprep.subr.mxu0 0.0
    %2191 = vmatpush1.msra.mxu0 %v2170
    %2192 = vmatprep.subr.mxu0 0.0
    %2193 = vmatpush1.msra.mxu0 %v2169
    %2194 = vmatprep.subr.mxu0 0.0
    %2195 = vmatpush1.msra.mxu0 %v2168
    %2196 = vmatprep.subr.mxu0 0.0
    %2197 = vmatpush1.msra.mxu0 %v2167
    %2198 = vmatprep.subr.mxu0 0.0
    %2199 = vmatpush1.msra.mxu0 %v2166
    %2200 = vmatprep.subr.mxu0 0.0
    %2201 = vmatpush1.msra.mxu0 %v2165
    %2202 = vmatprep.subr.mxu0 0.0
    %2203 = vmatpush1.msra.mxu0 %v2164
    %2204 = vmatprep.subr.mxu0 0.0
    %2205 = vmatpush1.msra.mxu0 %v2163
    %2206 = vmatprep.subr.mxu0 0.0
    %2207 = vmatpush1.msra.mxu0 %v2162
    %2208 = vmatprep.subr.mxu0 0.0
    %2209 = vmatpush1.msra.mxu0 %v2161
    %2210 = vmatprep.subr.mxu0 0.0
    %2211 = vmatpush1.msra.mxu0 %v2160
    %2212 = vmatprep.subr.mxu0 0.0
    %2213 = vmatpush1.msra.mxu0 %v2159
    %2214 = vmatprep.subr.mxu0 0.0
    %2215 = vmatpush2.msra.mxu0 0.0
    %2216 = vmatprep.subr.mxu0 0.0
    %2217 = vmatpush2.msra.mxu0 0.0
    %2218 = vmatprep.subr.mxu0 0.0
    %2219 = vmatpush2.msra.mxu0 0.0
    %2220 = vmatprep.subr.mxu0 0.0
    %2221 = vmatpush2.msra.mxu0 0.0
    %2222 = vmatprep.subr.mxu0 0.0
    %2223 = vmatpush2.msra.mxu0 0.0
    %2224 = vmatprep.subr.mxu0 0.0
    %2225 = vmatpush2.msra.mxu0 0.0
    %2226 = vmatprep.subr.mxu0 0.0
    %2227 = vmatpush2.msra.mxu0 0.0
    %2228 = vmatprep.subr.mxu0 0.0
    %2229 = vmatpush2.msra.mxu0 0.0
    %2230 = vmatprep.subr.mxu0 0.0
    %2231 = vmatpush2.msra.mxu0 0.0
    %2232 = vmatprep.subr.mxu0 0.0
    %2233 = vmatpush2.msra.mxu0 0.0
    %2234 = vmatprep.subr.mxu0 0.0
    %2235 = vmatpush2.msra.mxu0 0.0
    %2236 = vmatprep.subr.mxu0 0.0
    %2237 = vmatpush2.msra.mxu0 0.0
    %2238 = vmatprep.subr.mxu0 0.0
    %2239 = vmatpush2.msra.mxu0 0.0
    %2240 = vmatprep.subr.mxu0 0.0
    %2241 = vmatpush2.msra.mxu0 0.0
    %2242 = vmatprep.subr.mxu0 0.0
    %2243 = vmatpush2.msra.mxu0 0.0
    %2244 = vmatprep.subr.mxu0 0.0
    %2245 = vmatpush2.msra.mxu0 0.0
    %2246 = vmatprep.mubr.f32.mxu0 0.0
    %2247 = vmatmul.mubr.f32.gmra.mxu0 %v2157
    %v2248 = vpop.f32.mrf.mxu0
    %v2249 = vadd.f32 %v2180, %v2248
    %v2250 = vpop.f32.mrf.mxu0
    %2251 = vmatprep.mubr.f32.mxu0 0.0
    %2252 = vmatmul.mubr.f32.gmra.mxu0 %v2158
    %v2253 = vpop.f32.mrf.mxu0
    %v2254 = vadd.f32 %v2180, %v2253
    %v2255 = vpop.f32.mrf.mxu0
    %2256 = vdwg.mxu0
    %v2257 = vadd.f32 %v2019, %v2249
    %v2258 = vadd.f32 %v2020, %v2254
    %2259 = vst.msk [vmem:[#allocation2] sm:$0xff] %vm46, %v2257
    %2260 = vst.msk [vmem:[#allocation2 + $0x8] sm:$0xff] %vm46, %v2258
    // Predicated region
    $region50: #{transformer_block.1} parent=1 // pred_check
      _
    $region51: #{transformer_block.1} parent=1 // pred_check_branch
      %2262 = sbr.rel (0) target = $region53
    $region52: #{transformer_block.1} parent=1 // pred_region
      %s2264 = ssub.s32 256, 256
      %2265 = vsyncadd [#allocation3], %s2264
      %s2266 = sshll.u32 [#allocation2], 4
      %s2267 = int_to_ptr.vmem [resolvable:$true] %s2266
      %2272 = dma.vmem_to_hbm [thread:$0]  %s2267, 256, %s12, [#allocation3], 128, 128, 8
    $region53: #{transformer_block.1} parent=1 // pred_fallthru
      _
    // Predicated region
    $region54: #{transformer_block.1} parent=1 // pred_check
      _
    $region55: #{transformer_block.1} parent=1 // pred_check_branch
      %2274 = sbr.rel (0) target = $region57
    $region56: #{transformer_block.1} parent=1 // pred_region
      %2275 = dma.done [#allocation3], 256
    $region57: #{transformer_block.1} parent=1 // pred_fallthru
      _
    %2276 = vsyncpa [#allocation3], 1

</llo_original>
